<compile_context>
chip_gen: v7x
topology: tpu7x:2x2x1
jax: 0.10.0
libtpu: 0.0.40
codegen_flags: <defaults>
</compile_context>

<pallas_src>
import math
from functools import partial

import jax
import jax.numpy as jnp
from jax.experimental import pallas as pl
from jax.experimental.pallas import tpu as pltpu


# --------------------------------------------------------------------------
# Linear projection kernel:  out = (x @ w + b) * scale
# --------------------------------------------------------------------------
def _linear_kernel(x_ref, w_ref, b_ref, o_ref, acc_ref, *, scale):
    @pl.when(pl.program_id(2) == 0)
    def _():
        acc_ref[...] = jnp.zeros_like(acc_ref)

    acc_ref[...] += jnp.dot(x_ref[...], w_ref[...],
                            preferred_element_type=jnp.float32)

    @pl.when(pl.program_id(2) == pl.num_programs(2) - 1)
    def _():
        out = acc_ref[...] + b_ref[...]
        if scale != 1.0:              # static python branch (partial arg)
            out = out * scale
        o_ref[...] = out.astype(o_ref.dtype)


def _pick_tile(dim, target):
    # Use the target tile when it divides the dim, otherwise fall back to the
    # full dimension (full-extent blocks are always legal).
    # TODO(synk): pad ragged dims instead of falling back to full extent.
    return target if dim % target == 0 else dim


def linear(x, w, b, *, scale=1.0, tm=256, tn=256, tk=512):
    """x: (M, K), w: (K, N), b: (N,) -> (M, N)."""
    M, K = x.shape
    K2, N = w.shape
    assert K == K2
    tm = _pick_tile(M, tm)
    tn = _pick_tile(N, tn)
    tk = _pick_tile(K, tk)
    b2 = b.reshape(1, N)
    kernel = partial(_linear_kernel, scale=scale)
    return pl.pallas_call(
        kernel,
        out_shape=jax.ShapeDtypeStruct((M, N), x.dtype),
        grid=(M // tm, N // tn, K // tk),
        in_specs=[
            pl.BlockSpec((tm, tk), lambda i, j, kk: (i, kk)),
            pl.BlockSpec((tk, tn), lambda i, j, kk: (kk, j)),
            pl.BlockSpec((1, tn), lambda i, j, kk: (0, j)),
        ],
        out_specs=pl.BlockSpec((tm, tn), lambda i, j, kk: (i, j)),
        scratch_shapes=[pltpu.VMEM((tm, tn), jnp.float32)],
        compiler_params=pltpu.CompilerParams(
            dimension_semantics=("parallel", "parallel", "arbitrary")),
    )(x, w, b2)


# --------------------------------------------------------------------------
# Flash attention kernel (online softmax over kv tiles)
# --------------------------------------------------------------------------
def _flash_attn_kernel(q_ref, k_ref, v_ref, mask_ref, o_ref,
                       m_sc, l_sc, acc_sc):
    kj = pl.program_id(3)

    @pl.when(kj == 0)
    def _():
        m_sc[...] = jnp.full_like(m_sc, -jnp.inf)
        l_sc[...] = jnp.zeros_like(l_sc)
        acc_sc[...] = jnp.zeros_like(acc_sc)

    # s = q @ k^T  (contract over head_dim) -> (tq, tk), f32 on the MXU.
    s = jax.lax.dot_general(q_ref[...], k_ref[...],
                            (((1,), (1,)), ((), ())),
                            preferred_element_type=jnp.float32)
    s = s + mask_ref[...]

    m_new = jnp.maximum(m_sc[...], s.max(axis=-1, keepdims=True))
    alpha = jnp.exp(m_sc[...] - m_new)
    p = jnp.exp(s - m_new)
    l_sc[...] = alpha * l_sc[...] + p.sum(axis=-1, keepdims=True)
    acc_sc[...] = alpha * acc_sc[...] + jnp.dot(
        p.astype(v_ref.dtype), v_ref[...], preferred_element_type=jnp.float32)
    m_sc[...] = m_new

    @pl.when(kj == pl.num_programs(3) - 1)
    def _():
        inv_l = pl.reciprocal(l_sc[...], approx=True)
        o_ref[...] = (acc_sc[...] * inv_l).astype(o_ref.dtype)


def flash_attention(q, k, v, mask, *, tq=128, tk=128):
    """q: (B, H, T, D), k/v: (B, H, S, D), mask: (B, T, S) additive, f32."""
    B, H, T, D = q.shape
    S = k.shape[2]
    tq = _pick_tile(T, tq)
    tk = _pick_tile(S, tk)
    grid = (B, H, T // tq, S // tk)
    return pl.pallas_call(
        _flash_attn_kernel,
        out_shape=jax.ShapeDtypeStruct((B, H, T, D), q.dtype),
        grid=grid,
        in_specs=[
            pl.BlockSpec((None, None, tq, D), lambda b, h, qi, kj: (b, h, qi, 0)),
            pl.BlockSpec((None, None, tk, D), lambda b, h, qi, kj: (b, h, kj, 0)),
            pl.BlockSpec((None, None, tk, D), lambda b, h, qi, kj: (b, h, kj, 0)),
            pl.BlockSpec((None, tq, tk), lambda b, h, qi, kj: (b, qi, kj)),
        ],
        out_specs=pl.BlockSpec((None, None, tq, D),
                               lambda b, h, qi, kj: (b, h, qi, 0)),
        scratch_shapes=[pltpu.VMEM((tq, 1), jnp.float32),
                        pltpu.VMEM((tq, 1), jnp.float32),
                        pltpu.VMEM((tq, D), jnp.float32)],
        compiler_params=pltpu.CompilerParams(
            dimension_semantics=("parallel", "parallel", "parallel",
                                 "arbitrary")),
    )(q, k, v, mask)


# --------------------------------------------------------------------------
# Full module forward
# --------------------------------------------------------------------------
@partial(jax.jit, static_argnames=("num_heads",))
def attention_forward(params, hidden_states, key_value_states=None,
                      attention_mask=None, *, num_heads):
    B, T, E = hidden_states.shape
    kv_in = hidden_states if key_value_states is None else key_value_states
    S = kv_in.shape[1]
    D = E // num_heads
    scaling = D ** (-0.5)

    x = hidden_states.reshape(B * T, E)
    xkv = kv_in.reshape(B * S, E)

    # q-scaling is folded into the projection epilogue (one VPU mul, free).
    q = linear(x, params["q_w"], params["q_b"], scale=scaling)
    k = linear(xkv, params["k_w"], params["k_b"])
    v = linear(xkv, params["v_w"], params["v_b"])

    # Head split (layout plumbing, fused by XLA outside the kernels).
    q = q.reshape(B, T, num_heads, D).transpose(0, 2, 1, 3)
    k = k.reshape(B, S, num_heads, D).transpose(0, 2, 1, 3)
    v = v.reshape(B, S, num_heads, D).transpose(0, 2, 1, 3)

    if attention_mask is None:
        mask = jnp.zeros((B, T, S), jnp.float32)
    else:
        # PyTorch contract: (bsz, 1, tgt_len, src_len), shared across heads.
        mask = attention_mask.reshape(B, T, S).astype(jnp.float32)

    attn = flash_attention(q, k, v, mask)                 # (B, H, T, D)
    attn = attn.transpose(0, 2, 1, 3).reshape(B * T, E)   # merge heads

    out = linear(attn, params["out_w"], params["out_b"])
    return out.reshape(B, T, E)


# --------------------------------------------------------------------------
# Params + pure-JAX reference
# --------------------------------------------------------------------------
def init_params(key, embed_dim):
    ks = jax.random.split(key, 8)

    def w_init(k):
        return jax.random.normal(k, (embed_dim, embed_dim), jnp.float32) * 0.02

    def b_init(k):
        return jax.random.normal(k, (embed_dim,), jnp.float32) * 0.02

    return {
        "q_w": w_init(ks[0]), "q_b": b_init(ks[1]),
        "k_w": w_init(ks[2]), "k_b": b_init(ks[3]),
        "v_w": w_init(ks[4]), "v_b": b_init(ks[5]),
        "out_w": w_init(ks[6]), "out_b": b_init(ks[7]),
    }


def _reference(params, hidden_states, attention_mask, num_heads):
    B, T, E = hidden_states.shape
    D = E // num_heads
    scaling = D ** (-0.5)
    hi = jax.lax.Precision.HIGHEST

    def lin(x, w, b):
        return jnp.einsum("...i,io->...o", x, w, precision=hi) + b

    q = lin(hidden_states, params["q_w"], params["q_b"]) * scaling
    k = lin(hidden_states, params["k_w"], params["k_b"])
    v = lin(hidden_states, params["v_w"], params["v_b"])
    q = q.reshape(B, T, num_heads, D).transpose(0, 2, 1, 3)
    k = k.reshape(B, T, num_heads, D).transpose(0, 2, 1, 3)
    v = v.reshape(B, T, num_heads, D).transpose(0, 2, 1, 3)
    s = jnp.einsum("bhtd,bhsd->bhts", q, k, precision=hi)
    if attention_mask is not None:
        s = s + attention_mask
    p = jax.nn.softmax(s, axis=-1)
    o = jnp.einsum("bhts,bhsd->bhtd", p, v, precision=hi)
    o = o.transpose(0, 2, 1, 3).reshape(B, T, E)
    return lin(o, params["out_w"], params["out_b"])


if __name__ == "__main__":
    # Scaled-down config consistent with the module (hidden=1280, heads=32):
    # hidden=256, heads=4 (head_dim=64), batch=2, seq=8.
    E, NH = 256, 4
    B, T = 2, 8

    key = jax.random.PRNGKey(0)
    kp, kx = jax.random.split(key, 2)
    params = init_params(kp, E)
    x = jax.random.normal(kx, (B, T, E), jnp.float32)

    # Additive mask in the PyTorch (bsz, 1, tgt_len, src_len) contract
    # (causal: 0 where allowed, -1e9 where masked).
    causal = jnp.tril(jnp.ones((T, T), jnp.float32))
    attn_mask = jnp.where(causal == 1.0, 0.0, -1e9)[None, None, :, :]
    attn_mask = jnp.broadcast_to(attn_mask, (B, 1, T, T))

    out = attention_forward(params, x, attention_mask=attn_mask, num_heads=NH)
    out = jax.block_until_ready(out)

    ref = _reference(params, x, attn_mask, NH)
    assert out.shape == (B, T, E)
    assert jnp.allclose(out, ref, atol=1e-2, rtol=1e-2), \
        float(jnp.max(jnp.abs(out - ref)))

    print("KERNEL_OK")
</pallas_src>

<mosaic_0001>
module attributes {stable_mosaic.version = 11 : i64} {
  func.func @_linear_kernel(%arg0: i32, %arg1: i32, %arg2: i32, %arg3: memref<16x256xf32, #tpu.memory_space<vmem>>, %arg4: memref<256x256xf32, #tpu.memory_space<vmem>>, %arg5: memref<1x256xf32, #tpu.memory_space<vmem>>, %arg6: memref<16x256xf32, #tpu.memory_space<vmem>>, %arg7: memref<16x256xf32, #tpu.memory_space<vmem>>) attributes {dimension_semantics = [#tpu.dimension_semantics<parallel>, #tpu.dimension_semantics<parallel>, #tpu.dimension_semantics<arbitrary>], iteration_bounds = array<i64: 1, 1, 1>, scalar_prefetch = 0 : i64, scratch_operands = 1 : i64, tpu.core_type = #tpu.core_type<tc>, window_params = [{transform_indices = @transform_0, window_bounds = array<i64: 16, 256>}, {transform_indices = @transform_1, window_bounds = array<i64: 256, 256>}, {transform_indices = @transform_2, window_bounds = array<i64: 1, 256>}, {transform_indices = @transform_3, window_bounds = array<i64: 16, 256>}]} {
    %c0_i32 = arith.constant 0 : i32
    %0 = arith.cmpi eq, %arg2, %c0_i32 : i32
    %1 = arith.extui %0 : i1 to i32
    %c0_i32_0 = arith.constant 0 : i32
    %2 = arith.cmpi ne, %1, %c0_i32_0 : i32
    scf.if %2 {
      %cst_10 = arith.constant 0.000000e+00 : f32
      %12 = vector.broadcast %cst_10 : f32 to vector<16x256xf32>
      %c0_11 = arith.constant 0 : index
      %c0_12 = arith.constant 0 : index
      %13 = vector.load %arg7[%c0_11, %c0_12] : memref<16x256xf32, #tpu.memory_space<vmem>>, vector<16x256xf32>
      tpu.vector_store %arg7[%c0_11, %c0_12], %12 {strides = array<i32>} : memref<16x256xf32, #tpu.memory_space<vmem>>, vector<16x256xf32>,
    } else {
    }
    %c0 = arith.constant 0 : index
    %c0_1 = arith.constant 0 : index
    %3 = vector.load %arg7[%c0, %c0_1] : memref<16x256xf32, #tpu.memory_space<vmem>>, vector<16x256xf32>
    %c0_2 = arith.constant 0 : index
    %c0_3 = arith.constant 0 : index
    %4 = vector.load %arg3[%c0_2, %c0_3] : memref<16x256xf32, #tpu.memory_space<vmem>>, vector<16x256xf32>
    %c0_4 = arith.constant 0 : index
    %c0_5 = arith.constant 0 : index
    %5 = vector.load %arg4[%c0_4, %c0_5] : memref<256x256xf32, #tpu.memory_space<vmem>>, vector<256x256xf32>
    %cst = arith.constant dense<0.000000e+00> : vector<16x256xf32>
    %6 = tpu.matmul %4, %5, %cst {dimension_numbers = #tpu.dot_dimension_numbers<[1], [0], [0], [1], [0, 0, 1, 1], [], []>} : vector<16x256xf32>, vector<256x256xf32>, vector<16x256xf32> -> vector<16x256xf32>
    %7 = arith.addf %3, %6 : vector<16x256xf32>
    %c0_6 = arith.constant 0 : index
    %c0_7 = arith.constant 0 : index
    %8 = vector.load %arg7[%c0_6, %c0_7] : memref<16x256xf32, #tpu.memory_space<vmem>>, vector<16x256xf32>
    tpu.vector_store %arg7[%c0_6, %c0_7], %7 {strides = array<i32>} : memref<16x256xf32, #tpu.memory_space<vmem>>, vector<16x256xf32>,
    %c0_i32_8 = arith.constant 0 : i32
    %9 = arith.cmpi eq, %arg2, %c0_i32_8 : i32
    %10 = arith.extui %9 : i1 to i32
    %c0_i32_9 = arith.constant 0 : i32
    %11 = arith.cmpi ne, %10, %c0_i32_9 : i32
    scf.if %11 {
      %c0_10 = arith.constant 0 : index
      %c0_11 = arith.constant 0 : index
      %12 = vector.load %arg7[%c0_10, %c0_11] : memref<16x256xf32, #tpu.memory_space<vmem>>, vector<16x256xf32>
      %c0_12 = arith.constant 0 : index
      %c0_13 = arith.constant 0 : index
      %13 = vector.load %arg5[%c0_12, %c0_13] : memref<1x256xf32, #tpu.memory_space<vmem>>, vector<1x256xf32>
      %14 = vector.broadcast %13 : vector<1x256xf32> to vector<16x256xf32>
      %15 = arith.addf %12, %14 : vector<16x256xf32>
      %c0_14 = arith.constant 0 : index
      %c0_15 = arith.constant 0 : index
      %16 = vector.load %arg6[%c0_14, %c0_15] : memref<16x256xf32, #tpu.memory_space<vmem>>, vector<16x256xf32>
      tpu.vector_store %arg6[%c0_14, %c0_15], %15 {strides = array<i32>} : memref<16x256xf32, #tpu.memory_space<vmem>>, vector<16x256xf32>,
    } else {
    }
    return
  }
  func.func @transform_0(%arg0: i32, %arg1: i32, %arg2: i32) -> (i32, i32) {
    %c0_i32 = arith.constant 0 : i32
    return %arg0, %arg2 : i32, i32
  }
  func.func @transform_1(%arg0: i32, %arg1: i32, %arg2: i32) -> (i32, i32) {
    %c0_i32 = arith.constant 0 : i32
    return %arg2, %arg1 : i32, i32
  }
  func.func @transform_2(%arg0: i32, %arg1: i32, %arg2: i32) -> (i32, i32) {
    %c0_i32 = arith.constant 0 : i32
    %c0_i32_0 = arith.constant 0 : i32
    return %c0_i32, %arg1 : i32, i32
  }
  func.func @transform_3(%arg0: i32, %arg1: i32, %arg2: i32) -> (i32, i32) {
    %c0_i32 = arith.constant 0 : i32
    return %arg0, %arg1 : i32, i32
  }
}

module attributes {stable_mosaic.version = 11 : i64} {
  func.func @_linear_kernel(%arg0: i32, %arg1: i32, %arg2: i32, %arg3: memref<16x256xf32, #tpu.memory_space<vmem>>, %arg4: memref<256x256xf32, #tpu.memory_space<vmem>>, %arg5: memref<1x256xf32, #tpu.memory_space<vmem>>, %arg6: memref<16x256xf32, #tpu.memory_space<vmem>>, %arg7: memref<16x256xf32, #tpu.memory_space<vmem>>) attributes {dimension_semantics = [#tpu.dimension_semantics<parallel>, #tpu.dimension_semantics<parallel>, #tpu.dimension_semantics<arbitrary>], iteration_bounds = array<i64: 1, 1, 1>, scalar_prefetch = 0 : i64, scratch_operands = 1 : i64, tpu.core_type = #tpu.core_type<tc>, window_params = [{transform_indices = @transform_0, window_bounds = array<i64: 16, 256>}, {transform_indices = @transform_1, window_bounds = array<i64: 256, 256>}, {transform_indices = @transform_2, window_bounds = array<i64: 1, 256>}, {transform_indices = @transform_3, window_bounds = array<i64: 16, 256>}]} {
    %c0_i32 = arith.constant 0 : i32
    %0 = arith.cmpi eq, %arg2, %c0_i32 : i32
    %1 = arith.extui %0 : i1 to i32
    %c0_i32_0 = arith.constant 0 : i32
    %2 = arith.cmpi ne, %1, %c0_i32_0 : i32
    scf.if %2 {
      %cst_10 = arith.constant 0.000000e+00 : f32
      %12 = vector.broadcast %cst_10 : f32 to vector<16x256xf32>
      %c0_11 = arith.constant 0 : index
      %c0_12 = arith.constant 0 : index
      %13 = vector.load %arg7[%c0_11, %c0_12] : memref<16x256xf32, #tpu.memory_space<vmem>>, vector<16x256xf32>
      tpu.vector_store %arg7[%c0_11, %c0_12], %12 {strides = array<i32>} : memref<16x256xf32, #tpu.memory_space<vmem>>, vector<16x256xf32>,
    } else {
    }
    %c0 = arith.constant 0 : index
    %c0_1 = arith.constant 0 : index
    %3 = vector.load %arg7[%c0, %c0_1] : memref<16x256xf32, #tpu.memory_space<vmem>>, vector<16x256xf32>
    %c0_2 = arith.constant 0 : index
    %c0_3 = arith.constant 0 : index
    %4 = vector.load %arg3[%c0_2, %c0_3] : memref<16x256xf32, #tpu.memory_space<vmem>>, vector<16x256xf32>
    %c0_4 = arith.constant 0 : index
    %c0_5 = arith.constant 0 : index
    %5 = vector.load %arg4[%c0_4, %c0_5] : memref<256x256xf32, #tpu.memory_space<vmem>>, vector<256x256xf32>
    %cst = arith.constant dense<0.000000e+00> : vector<16x256xf32>
    %6 = tpu.matmul %4, %5, %cst {dimension_numbers = #tpu.dot_dimension_numbers<[1], [0], [0], [1], [0, 0, 1, 1], [], []>} : vector<16x256xf32>, vector<256x256xf32>, vector<16x256xf32> -> vector<16x256xf32>
    %7 = arith.addf %3, %6 : vector<16x256xf32>
    %c0_6 = arith.constant 0 : index
    %c0_7 = arith.constant 0 : index
    %8 = vector.load %arg7[%c0_6, %c0_7] : memref<16x256xf32, #tpu.memory_space<vmem>>, vector<16x256xf32>
    tpu.vector_store %arg7[%c0_6, %c0_7], %7 {strides = array<i32>} : memref<16x256xf32, #tpu.memory_space<vmem>>, vector<16x256xf32>,
    %c0_i32_8 = arith.constant 0 : i32
    %9 = arith.cmpi eq, %arg2, %c0_i32_8 : i32
    %10 = arith.extui %9 : i1 to i32
    %c0_i32_9 = arith.constant 0 : i32
    %11 = arith.cmpi ne, %10, %c0_i32_9 : i32
    scf.if %11 {
      %c0_10 = arith.constant 0 : index
      %c0_11 = arith.constant 0 : index
      %12 = vector.load %arg7[%c0_10, %c0_11] : memref<16x256xf32, #tpu.memory_space<vmem>>, vector<16x256xf32>
      %c0_12 = arith.constant 0 : index
      %c0_13 = arith.constant 0 : index
      %13 = vector.load %arg5[%c0_12, %c0_13] : memref<1x256xf32, #tpu.memory_space<vmem>>, vector<1x256xf32>
      %14 = vector.broadcast %13 : vector<1x256xf32> to vector<16x256xf32>
      %15 = arith.addf %12, %14 : vector<16x256xf32>
      %c0_14 = arith.constant 0 : index
      %c0_15 = arith.constant 0 : index
      %16 = vector.load %arg6[%c0_14, %c0_15] : memref<16x256xf32, #tpu.memory_space<vmem>>, vector<16x256xf32>
      tpu.vector_store %arg6[%c0_14, %c0_15], %15 {strides = array<i32>} : memref<16x256xf32, #tpu.memory_space<vmem>>, vector<16x256xf32>,
    } else {
    }
    return
  }
  func.func @transform_0(%arg0: i32, %arg1: i32, %arg2: i32) -> (i32, i32) {
    %c0_i32 = arith.constant 0 : i32
    return %arg0, %arg2 : i32, i32
  }
  func.func @transform_1(%arg0: i32, %arg1: i32, %arg2: i32) -> (i32, i32) {
    %c0_i32 = arith.constant 0 : i32
    return %arg2, %arg1 : i32, i32
  }
  func.func @transform_2(%arg0: i32, %arg1: i32, %arg2: i32) -> (i32, i32) {
    %c0_i32 = arith.constant 0 : i32
    %c0_i32_0 = arith.constant 0 : i32
    return %c0_i32, %arg1 : i32, i32
  }
  func.func @transform_3(%arg0: i32, %arg1: i32, %arg2: i32) -> (i32, i32) {
    %c0_i32 = arith.constant 0 : i32
    return %arg0, %arg1 : i32, i32
  }
}

module attributes {stable_mosaic.version = 11 : i64} {
  func.func @_flash_attn_kernel(%arg0: i32, %arg1: i32, %arg2: i32, %arg3: i32, %arg4: memref<1x1x8x64xf32, #tpu.memory_space<vmem>>, %arg5: memref<1x1x8x64xf32, #tpu.memory_space<vmem>>, %arg6: memref<1x1x8x64xf32, #tpu.memory_space<vmem>>, %arg7: memref<1x8x8xf32, #tpu.memory_space<vmem>>, %arg8: memref<1x1x8x64xf32, #tpu.memory_space<vmem>>, %arg9: memref<8x1xf32, #tpu.memory_space<vmem>>, %arg10: memref<8x1xf32, #tpu.memory_space<vmem>>, %arg11: memref<8x64xf32, #tpu.memory_space<vmem>>) attributes {dimension_semantics = [#tpu.dimension_semantics<parallel>, #tpu.dimension_semantics<parallel>, #tpu.dimension_semantics<parallel>, #tpu.dimension_semantics<arbitrary>], iteration_bounds = array<i64: 2, 4, 1, 1>, scalar_prefetch = 0 : i64, scratch_operands = 3 : i64, tpu.core_type = #tpu.core_type<tc>, window_params = [{transform_indices = @transform_0, window_bounds = array<i64: 1, 1, 8, 64>}, {transform_indices = @transform_1, window_bounds = array<i64: 1, 1, 8, 64>}, {transform_indices = @transform_2, window_bounds = array<i64: 1, 1, 8, 64>}, {transform_indices = @transform_3, window_bounds = array<i64: 1, 8, 8>}, {transform_indices = @transform_4, window_bounds = array<i64: 1, 1, 8, 64>}]} {
    %c0_i32 = arith.constant 0 : i32
    %0 = arith.cmpi eq, %arg3, %c0_i32 : i32
    %1 = arith.extui %0 : i1 to i32
    %c0_i32_0 = arith.constant 0 : i32
    %2 = arith.cmpi ne, %1, %c0_i32_0 : i32
    scf.if %2 {
      %cst_34 = arith.constant 0xFF800000 : f32
      %39 = vector.broadcast %cst_34 : f32 to vector<8x1xf32>
      %c0_35 = arith.constant 0 : index
      %c0_36 = arith.constant 0 : index
      %40 = vector.load %arg9[%c0_35, %c0_36] : memref<8x1xf32, #tpu.memory_space<vmem>>, vector<8x1xf32>
      tpu.vector_store %arg9[%c0_35, %c0_36], %39 {strides = array<i32>} : memref<8x1xf32, #tpu.memory_space<vmem>>, vector<8x1xf32>,
      %cst_37 = arith.constant 0.000000e+00 : f32
      %41 = vector.broadcast %cst_37 : f32 to vector<8x1xf32>
      %c0_38 = arith.constant 0 : index
      %c0_39 = arith.constant 0 : index
      %42 = vector.load %arg10[%c0_38, %c0_39] : memref<8x1xf32, #tpu.memory_space<vmem>>, vector<8x1xf32>
      tpu.vector_store %arg10[%c0_38, %c0_39], %41 {strides = array<i32>} : memref<8x1xf32, #tpu.memory_space<vmem>>, vector<8x1xf32>,
      %cst_40 = arith.constant 0.000000e+00 : f32
      %43 = vector.broadcast %cst_40 : f32 to vector<8x64xf32>
      %c0_41 = arith.constant 0 : index
      %c0_42 = arith.constant 0 : index
      %44 = vector.load %arg11[%c0_41, %c0_42] : memref<8x64xf32, #tpu.memory_space<vmem>>, vector<8x64xf32>
      tpu.vector_store %arg11[%c0_41, %c0_42], %43 {strides = array<i32>} : memref<8x64xf32, #tpu.memory_space<vmem>>, vector<8x64xf32>,
    } else {
    }
    %c0 = arith.constant 0 : index
    %c0_1 = arith.constant 0 : index
    %c0_2 = arith.constant 0 : index
    %c0_3 = arith.constant 0 : index
    %3 = vector.load %arg4[%c0, %c0_1, %c0_2, %c0_3] : memref<1x1x8x64xf32, #tpu.memory_space<vmem>>, vector<1x1x8x64xf32>
    %4 = vector.shape_cast %3 : vector<1x1x8x64xf32> to vector<8x64xf32>
    %c0_4 = arith.constant 0 : index
    %c0_5 = arith.constant 0 : index
    %c0_6 = arith.constant 0 : index
    %c0_7 = arith.constant 0 : index
    %5 = vector.load %arg5[%c0_4, %c0_5, %c0_6, %c0_7] : memref<1x1x8x64xf32, #tpu.memory_space<vmem>>, vector<1x1x8x64xf32>
    %6 = vector.shape_cast %5 : vector<1x1x8x64xf32> to vector<8x64xf32>
    %cst = arith.constant dense<0.000000e+00> : vector<8x8xf32>
    %7 = tpu.matmul %4, %6, %cst {dimension_numbers = #tpu.dot_dimension_numbers<[1], [1], [0], [0], [0, 0, 1, 0], [], []>} : vector<8x64xf32>, vector<8x64xf32>, vector<8x8xf32> -> vector<8x8xf32>
    %c0_8 = arith.constant 0 : index
    %c0_9 = arith.constant 0 : index
    %c0_10 = arith.constant 0 : index
    %8 = vector.load %arg7[%c0_8, %c0_9, %c0_10] : memref<1x8x8xf32, #tpu.memory_space<vmem>>, vector<1x8x8xf32>
    %9 = vector.shape_cast %8 : vector<1x8x8xf32> to vector<8x8xf32>
    %10 = arith.addf %7, %9 : vector<8x8xf32>
    %c0_11 = arith.constant 0 : index
    %c0_12 = arith.constant 0 : index
    %11 = vector.load %arg9[%c0_11, %c0_12] : memref<8x1xf32, #tpu.memory_space<vmem>>, vector<8x1xf32>
    %cst_13 = arith.constant dense<0xFF800000> : vector<8xf32>
    %12 = vector.multi_reduction <maximumf>, %10, %cst_13 [1] : vector<8x8xf32> to vector<8xf32>
    %13 = vector.shape_cast %12 : vector<8xf32> to vector<8x1xf32>
    %14 = arith.maximumf %11, %13 : vector<8x1xf32>
    %c0_14 = arith.constant 0 : index
    %c0_15 = arith.constant 0 : index
    %15 = vector.load %arg9[%c0_14, %c0_15] : memref<8x1xf32, #tpu.memory_space<vmem>>, vector<8x1xf32>
    %16 = arith.subf %15, %14 : vector<8x1xf32>
    %17 = math.exp %16 : vector<8x1xf32>
    %18 = vector.broadcast %14 : vector<8x1xf32> to vector<8x8xf32>
    %19 = arith.subf %10, %18 : vector<8x8xf32>
    %20 = math.exp %19 : vector<8x8xf32>
    %c0_16 = arith.constant 0 : index
    %c0_17 = arith.constant 0 : index
    %21 = vector.load %arg10[%c0_16, %c0_17] : memref<8x1xf32, #tpu.memory_space<vmem>>, vector<8x1xf32>
    %22 = arith.mulf %17, %21 : vector<8x1xf32>
    %cst_18 = arith.constant dense<0.000000e+00> : vector<8xf32>
    %23 = vector.multi_reduction <add>, %20, %cst_18 [1] : vector<8x8xf32> to vector<8xf32>
    %24 = vector.shape_cast %23 : vector<8xf32> to vector<8x1xf32>
    %25 = arith.addf %22, %24 : vector<8x1xf32>
    %c0_19 = arith.constant 0 : index
    %c0_20 = arith.constant 0 : index
    %26 = vector.load %arg10[%c0_19, %c0_20] : memref<8x1xf32, #tpu.memory_space<vmem>>, vector<8x1xf32>
    tpu.vector_store %arg10[%c0_19, %c0_20], %25 {strides = array<i32>} : memref<8x1xf32, #tpu.memory_space<vmem>>, vector<8x1xf32>,
    %c0_21 = arith.constant 0 : index
    %c0_22 = arith.constant 0 : index
    %27 = vector.load %arg11[%c0_21, %c0_22] : memref<8x64xf32, #tpu.memory_space<vmem>>, vector<8x64xf32>
    %28 = vector.broadcast %17 : vector<8x1xf32> to vector<8x64xf32>
    %29 = arith.mulf %28, %27 : vector<8x64xf32>
    %c0_23 = arith.constant 0 : index
    %c0_24 = arith.constant 0 : index
    %c0_25 = arith.constant 0 : index
    %c0_26 = arith.constant 0 : index
    %30 = vector.load %arg6[%c0_23, %c0_24, %c0_25, %c0_26] : memref<1x1x8x64xf32, #tpu.memory_space<vmem>>, vector<1x1x8x64xf32>
    %31 = vector.shape_cast %30 : vector<1x1x8x64xf32> to vector<8x64xf32>
    %cst_27 = arith.constant dense<0.000000e+00> : vector<8x64xf32>
    %32 = tpu.matmul %20, %31, %cst_27 {dimension_numbers = #tpu.dot_dimension_numbers<[1], [0], [0], [1], [0, 0, 1, 1], [], []>} : vector<8x8xf32>, vector<8x64xf32>, vector<8x64xf32> -> vector<8x64xf32>
    %33 = arith.addf %29, %32 : vector<8x64xf32>
    %c0_28 = arith.constant 0 : index
    %c0_29 = arith.constant 0 : index
    %34 = vector.load %arg11[%c0_28, %c0_29] : memref<8x64xf32, #tpu.memory_space<vmem>>, vector<8x64xf32>
    tpu.vector_store %arg11[%c0_28, %c0_29], %33 {strides = array<i32>} : memref<8x64xf32, #tpu.memory_space<vmem>>, vector<8x64xf32>,
    %c0_30 = arith.constant 0 : index
    %c0_31 = arith.constant 0 : index
    %35 = vector.load %arg9[%c0_30, %c0_31] : memref<8x1xf32, #tpu.memory_space<vmem>>, vector<8x1xf32>
    tpu.vector_store %arg9[%c0_30, %c0_31], %14 {strides = array<i32>} : memref<8x1xf32, #tpu.memory_space<vmem>>, vector<8x1xf32>,
    %c0_i32_32 = arith.constant 0 : i32
    %36 = arith.cmpi eq, %arg3, %c0_i32_32 : i32
    %37 = arith.extui %36 : i1 to i32
    %c0_i32_33 = arith.constant 0 : i32
    %38 = arith.cmpi ne, %37, %c0_i32_33 : i32
    scf.if %38 {
      %c0_34 = arith.constant 0 : index
      %c0_35 = arith.constant 0 : index
      %39 = vector.load %arg10[%c0_34, %c0_35] : memref<8x1xf32, #tpu.memory_space<vmem>>, vector<8x1xf32>
      %40 = tpu.reciprocal %39 {approx = true} : vector<8x1xf32> -> vector<8x1xf32>
      %c0_36 = arith.constant 0 : index
      %c0_37 = arith.constant 0 : index
      %41 = vector.load %arg11[%c0_36, %c0_37] : memref<8x64xf32, #tpu.memory_space<vmem>>, vector<8x64xf32>
      %42 = vector.broadcast %40 : vector<8x1xf32> to vector<8x64xf32>
      %43 = arith.mulf %41, %42 : vector<8x64xf32>
      %c0_38 = arith.constant 0 : index
      %c0_39 = arith.constant 0 : index
      %c0_40 = arith.constant 0 : index
      %c0_41 = arith.constant 0 : index
      %44 = vector.load %arg8[%c0_38, %c0_39, %c0_40, %c0_41] : memref<1x1x8x64xf32, #tpu.memory_space<vmem>>, vector<1x1x8x64xf32>
      %45 = vector.shape_cast %44 : vector<1x1x8x64xf32> to vector<8x64xf32>
      %46 = vector.shape_cast %43 : vector<8x64xf32> to vector<1x1x8x64xf32>
      tpu.vector_store %arg8[%c0_38, %c0_39, %c0_40, %c0_41], %46 {strides = array<i32>} : memref<1x1x8x64xf32, #tpu.memory_space<vmem>>, vector<1x1x8x64xf32>,
    } else {
    }
    return
  }
  func.func @transform_0(%arg0: i32, %arg1: i32, %arg2: i32, %arg3: i32) -> (i32, i32, i32, i32) {
    %c0_i32 = arith.constant 0 : i32
    %c0_i32_0 = arith.constant 0 : i32
    return %arg0, %arg1, %arg2, %c0_i32 : i32, i32, i32, i32
  }
  func.func @transform_1(%arg0: i32, %arg1: i32, %arg2: i32, %arg3: i32) -> (i32, i32, i32, i32) {
    %c0_i32 = arith.constant 0 : i32
    %c0_i32_0 = arith.constant 0 : i32
    return %arg0, %arg1, %arg3, %c0_i32 : i32, i32, i32, i32
  }
  func.func @transform_2(%arg0: i32, %arg1: i32, %arg2: i32, %arg3: i32) -> (i32, i32, i32, i32) {
    %c0_i32 = arith.constant 0 : i32
    %c0_i32_0 = arith.constant 0 : i32
    return %arg0, %arg1, %arg3, %c0_i32 : i32, i32, i32, i32
  }
  func.func @transform_3(%arg0: i32, %arg1: i32, %arg2: i32, %arg3: i32) -> (i32, i32, i32) {
    %c0_i32 = arith.constant 0 : i32
    return %arg0, %arg2, %arg3 : i32, i32, i32
  }
  func.func @transform_4(%arg0: i32, %arg1: i32, %arg2: i32, %arg3: i32) -> (i32, i32, i32, i32) {
    %c0_i32 = arith.constant 0 : i32
    %c0_i32_0 = arith.constant 0 : i32
    return %arg0, %arg1, %arg2, %c0_i32 : i32, i32, i32, i32
  }
}

module attributes {stable_mosaic.version = 11 : i64} {
  func.func @_linear_kernel(%arg0: i32, %arg1: i32, %arg2: i32, %arg3: memref<16x256xf32, #tpu.memory_space<vmem>>, %arg4: memref<256x256xf32, #tpu.memory_space<vmem>>, %arg5: memref<1x256xf32, #tpu.memory_space<vmem>>, %arg6: memref<16x256xf32, #tpu.memory_space<vmem>>, %arg7: memref<16x256xf32, #tpu.memory_space<vmem>>) attributes {dimension_semantics = [#tpu.dimension_semantics<parallel>, #tpu.dimension_semantics<parallel>, #tpu.dimension_semantics<arbitrary>], iteration_bounds = array<i64: 1, 1, 1>, scalar_prefetch = 0 : i64, scratch_operands = 1 : i64, tpu.core_type = #tpu.core_type<tc>, window_params = [{transform_indices = @transform_0, window_bounds = array<i64: 16, 256>}, {transform_indices = @transform_1, window_bounds = array<i64: 256, 256>}, {transform_indices = @transform_2, window_bounds = array<i64: 1, 256>}, {transform_indices = @transform_3, window_bounds = array<i64: 16, 256>}]} {
    %c0_i32 = arith.constant 0 : i32
    %0 = arith.cmpi eq, %arg2, %c0_i32 : i32
    %1 = arith.extui %0 : i1 to i32
    %c0_i32_0 = arith.constant 0 : i32
    %2 = arith.cmpi ne, %1, %c0_i32_0 : i32
    scf.if %2 {
      %cst_10 = arith.constant 0.000000e+00 : f32
      %12 = vector.broadcast %cst_10 : f32 to vector<16x256xf32>
      %c0_11 = arith.constant 0 : index
      %c0_12 = arith.constant 0 : index
      %13 = vector.load %arg7[%c0_11, %c0_12] : memref<16x256xf32, #tpu.memory_space<vmem>>, vector<16x256xf32>
      tpu.vector_store %arg7[%c0_11, %c0_12], %12 {strides = array<i32>} : memref<16x256xf32, #tpu.memory_space<vmem>>, vector<16x256xf32>,
    } else {
    }
    %c0 = arith.constant 0 : index
    %c0_1 = arith.constant 0 : index
    %3 = vector.load %arg7[%c0, %c0_1] : memref<16x256xf32, #tpu.memory_space<vmem>>, vector<16x256xf32>
    %c0_2 = arith.constant 0 : index
    %c0_3 = arith.constant 0 : index
    %4 = vector.load %arg3[%c0_2, %c0_3] : memref<16x256xf32, #tpu.memory_space<vmem>>, vector<16x256xf32>
    %c0_4 = arith.constant 0 : index
    %c0_5 = arith.constant 0 : index
    %5 = vector.load %arg4[%c0_4, %c0_5] : memref<256x256xf32, #tpu.memory_space<vmem>>, vector<256x256xf32>
    %cst = arith.constant dense<0.000000e+00> : vector<16x256xf32>
    %6 = tpu.matmul %4, %5, %cst {dimension_numbers = #tpu.dot_dimension_numbers<[1], [0], [0], [1], [0, 0, 1, 1], [], []>} : vector<16x256xf32>, vector<256x256xf32>, vector<16x256xf32> -> vector<16x256xf32>
    %7 = arith.addf %3, %6 : vector<16x256xf32>
    %c0_6 = arith.constant 0 : index
    %c0_7 = arith.constant 0 : index
    %8 = vector.load %arg7[%c0_6, %c0_7] : memref<16x256xf32, #tpu.memory_space<vmem>>, vector<16x256xf32>
    tpu.vector_store %arg7[%c0_6, %c0_7], %7 {strides = array<i32>} : memref<16x256xf32, #tpu.memory_space<vmem>>, vector<16x256xf32>,
    %c0_i32_8 = arith.constant 0 : i32
    %9 = arith.cmpi eq, %arg2, %c0_i32_8 : i32
    %10 = arith.extui %9 : i1 to i32
    %c0_i32_9 = arith.constant 0 : i32
    %11 = arith.cmpi ne, %10, %c0_i32_9 : i32
    scf.if %11 {
      %c0_10 = arith.constant 0 : index
      %c0_11 = arith.constant 0 : index
      %12 = vector.load %arg7[%c0_10, %c0_11] : memref<16x256xf32, #tpu.memory_space<vmem>>, vector<16x256xf32>
      %c0_12 = arith.constant 0 : index
      %c0_13 = arith.constant 0 : index
      %13 = vector.load %arg5[%c0_12, %c0_13] : memref<1x256xf32, #tpu.memory_space<vmem>>, vector<1x256xf32>
      %14 = vector.broadcast %13 : vector<1x256xf32> to vector<16x256xf32>
      %15 = arith.addf %12, %14 : vector<16x256xf32>
      %cst_14 = arith.constant 1.250000e-01 : f32
      %16 = vector.broadcast %cst_14 : f32 to vector<16x256xf32>
      %17 = arith.mulf %15, %16 : vector<16x256xf32>
      %c0_15 = arith.constant 0 : index
      %c0_16 = arith.constant 0 : index
      %18 = vector.load %arg6[%c0_15, %c0_16] : memref<16x256xf32, #tpu.memory_space<vmem>>, vector<16x256xf32>
      tpu.vector_store %arg6[%c0_15, %c0_16], %17 {strides = array<i32>} : memref<16x256xf32, #tpu.memory_space<vmem>>, vector<16x256xf32>,
    } else {
    }
    return
  }
  func.func @transform_0(%arg0: i32, %arg1: i32, %arg2: i32) -> (i32, i32) {
    %c0_i32 = arith.constant 0 : i32
    return %arg0, %arg2 : i32, i32
  }
  func.func @transform_1(%arg0: i32, %arg1: i32, %arg2: i32) -> (i32, i32) {
    %c0_i32 = arith.constant 0 : i32
    return %arg2, %arg1 : i32, i32
  }
  func.func @transform_2(%arg0: i32, %arg1: i32, %arg2: i32) -> (i32, i32) {
    %c0_i32 = arith.constant 0 : i32
    %c0_i32_0 = arith.constant 0 : i32
    return %c0_i32, %arg1 : i32, i32
  }
  func.func @transform_3(%arg0: i32, %arg1: i32, %arg2: i32) -> (i32, i32) {
    %c0_i32 = arith.constant 0 : i32
    return %arg0, %arg1 : i32, i32
  }
}

module attributes {stable_mosaic.version = 11 : i64} {
  func.func @_linear_kernel(%arg0: i32, %arg1: i32, %arg2: i32, %arg3: memref<16x256xf32, #tpu.memory_space<vmem>>, %arg4: memref<256x256xf32, #tpu.memory_space<vmem>>, %arg5: memref<1x256xf32, #tpu.memory_space<vmem>>, %arg6: memref<16x256xf32, #tpu.memory_space<vmem>>, %arg7: memref<16x256xf32, #tpu.memory_space<vmem>>) attributes {dimension_semantics = [#tpu.dimension_semantics<parallel>, #tpu.dimension_semantics<parallel>, #tpu.dimension_semantics<arbitrary>], iteration_bounds = array<i64: 1, 1, 1>, scalar_prefetch = 0 : i64, scratch_operands = 1 : i64, tpu.core_type = #tpu.core_type<tc>, window_params = [{transform_indices = @transform_0, window_bounds = array<i64: 16, 256>}, {transform_indices = @transform_1, window_bounds = array<i64: 256, 256>}, {transform_indices = @transform_2, window_bounds = array<i64: 1, 256>}, {transform_indices = @transform_3, window_bounds = array<i64: 16, 256>}]} {
    %c0_i32 = arith.constant 0 : i32
    %0 = arith.cmpi eq, %arg2, %c0_i32 : i32
    %1 = arith.extui %0 : i1 to i32
    %c0_i32_0 = arith.constant 0 : i32
    %2 = arith.cmpi ne, %1, %c0_i32_0 : i32
    scf.if %2 {
      %cst_10 = arith.constant 0.000000e+00 : f32
      %12 = vector.broadcast %cst_10 : f32 to vector<16x256xf32>
      %c0_11 = arith.constant 0 : index
      %c0_12 = arith.constant 0 : index
      %13 = vector.load %arg7[%c0_11, %c0_12] : memref<16x256xf32, #tpu.memory_space<vmem>>, vector<16x256xf32>
      tpu.vector_store %arg7[%c0_11, %c0_12], %12 {strides = array<i32>} : memref<16x256xf32, #tpu.memory_space<vmem>>, vector<16x256xf32>,
    } else {
    }
    %c0 = arith.constant 0 : index
    %c0_1 = arith.constant 0 : index
    %3 = vector.load %arg7[%c0, %c0_1] : memref<16x256xf32, #tpu.memory_space<vmem>>, vector<16x256xf32>
    %c0_2 = arith.constant 0 : index
    %c0_3 = arith.constant 0 : index
    %4 = vector.load %arg3[%c0_2, %c0_3] : memref<16x256xf32, #tpu.memory_space<vmem>>, vector<16x256xf32>
    %c0_4 = arith.constant 0 : index
    %c0_5 = arith.constant 0 : index
    %5 = vector.load %arg4[%c0_4, %c0_5] : memref<256x256xf32, #tpu.memory_space<vmem>>, vector<256x256xf32>
    %cst = arith.constant dense<0.000000e+00> : vector<16x256xf32>
    %6 = tpu.matmul %4, %5, %cst {dimension_numbers = #tpu.dot_dimension_numbers<[1], [0], [0], [1], [0, 0, 1, 1], [], []>} : vector<16x256xf32>, vector<256x256xf32>, vector<16x256xf32> -> vector<16x256xf32>
    %7 = arith.addf %3, %6 : vector<16x256xf32>
    %c0_6 = arith.constant 0 : index
    %c0_7 = arith.constant 0 : index
    %8 = vector.load %arg7[%c0_6, %c0_7] : memref<16x256xf32, #tpu.memory_space<vmem>>, vector<16x256xf32>
    tpu.vector_store %arg7[%c0_6, %c0_7], %7 {strides = array<i32>} : memref<16x256xf32, #tpu.memory_space<vmem>>, vector<16x256xf32>,
    %c0_i32_8 = arith.constant 0 : i32
    %9 = arith.cmpi eq, %arg2, %c0_i32_8 : i32
    %10 = arith.extui %9 : i1 to i32
    %c0_i32_9 = arith.constant 0 : i32
    %11 = arith.cmpi ne, %10, %c0_i32_9 : i32
    scf.if %11 {
      %c0_10 = arith.constant 0 : index
      %c0_11 = arith.constant 0 : index
      %12 = vector.load %arg7[%c0_10, %c0_11] : memref<16x256xf32, #tpu.memory_space<vmem>>, vector<16x256xf32>
      %c0_12 = arith.constant 0 : index
      %c0_13 = arith.constant 0 : index
      %13 = vector.load %arg5[%c0_12, %c0_13] : memref<1x256xf32, #tpu.memory_space<vmem>>, vector<1x256xf32>
      %14 = vector.broadcast %13 : vector<1x256xf32> to vector<16x256xf32>
      %15 = arith.addf %12, %14 : vector<16x256xf32>
      %c0_14 = arith.constant 0 : index
      %c0_15 = arith.constant 0 : index
      %16 = vector.load %arg6[%c0_14, %c0_15] : memref<16x256xf32, #tpu.memory_space<vmem>>, vector<16x256xf32>
      tpu.vector_store %arg6[%c0_14, %c0_15], %15 {strides = array<i32>} : memref<16x256xf32, #tpu.memory_space<vmem>>, vector<16x256xf32>,
    } else {
    }
    return
  }
  func.func @transform_0(%arg0: i32, %arg1: i32, %arg2: i32) -> (i32, i32) {
    %c0_i32 = arith.constant 0 : i32
    return %arg0, %arg2 : i32, i32
  }
  func.func @transform_1(%arg0: i32, %arg1: i32, %arg2: i32) -> (i32, i32) {
    %c0_i32 = arith.constant 0 : i32
    return %arg2, %arg1 : i32, i32
  }
  func.func @transform_2(%arg0: i32, %arg1: i32, %arg2: i32) -> (i32, i32) {
    %c0_i32 = arith.constant 0 : i32
    %c0_i32_0 = arith.constant 0 : i32
    return %c0_i32, %arg1 : i32, i32
  }
  func.func @transform_3(%arg0: i32, %arg1: i32, %arg2: i32) -> (i32, i32) {
    %c0_i32 = arith.constant 0 : i32
    return %arg0, %arg1 : i32, i32
  }
}

</mosaic_0001>

<llo_original>
// kernel: attention_forward.6
$region0: #{attention_forward.6}
  #allocation0 [shape = 'u32[]', space=smem, size = 0x4, offset = 0x4, fixed_abs, tag = 'smem constant byte address 0x4 - core index']
  #allocation1 [shape = 'u32[144,128]{1,0:T(1,128)}', space=vmem, size = 0x12000, scoped, tag = 'internal scratch']
  #allocation2 [shape = 'f32[16,256]{1,0:T(8,128)}', space=vmem, size = 0x4000, scoped, tag = 'scratch operand']
  %s0 = inlined_call_operand.vmem [shape: f32[16,256], index: 0, kind: input, shape index: {}]
  %s1 = inlined_call_operand.hbm [shape: f32[256,256], index: 1, kind: input, shape index: {}]
  %s2 = inlined_call_operand.vmem [shape: f32[1,256], index: 2, kind: input, shape index: {}]
  %s3 = inlined_call_operand.vmem [shape: f32[16,256], index: 3, kind: output, shape index: {}]
  %s4 = sld [smem:[#allocation0]]
  $region34: #{attention_forward.6} parent=0
    _
  %s6 = ssub.s32 1, %s4
  %s7 = scalar_select 0, %s6, %s4
  $region1: #{attention_forward.6} parent=0
    #allocation3 [shape = 'u8[262144]{0}', space=vmem, size = 0x40000, scoped, tag = 'input window, operand 1, single buffered']
    #allocation4 [shape = 's32[1]{0}', space=sflag, size = 0x4, scoped, tag = 'scoped memory for attention_forward.6']
    %8 = vsyncpa [#allocation4], 0
    // Predicated region
    $region2: #{attention_forward.6} parent=1 // pred_check
      _
    $region3: #{attention_forward.6} parent=1 // pred_check_branch
      %10 = sbr.rel (0) target = $region5
    $region4: #{attention_forward.6} parent=1 // pred_region
      _
    $region5: #{attention_forward.6} parent=1 // pred_fallthru
      _
    // Predicated region
    $region6: #{attention_forward.6} parent=1 // pred_check
      _
    $region7: #{attention_forward.6} parent=1 // pred_check_branch
      %12 = sbr.rel (0) target = $region9
    $region8: #{attention_forward.6} parent=1 // pred_region
      %s14 = ssub.s32 8192, 8192
      %15 = vsyncadd [#allocation4], %s14
      %s16 = sshll.u32 [#allocation3], 4
      %s17 = int_to_ptr.vmem [resolvable:$true] %s16
      %22 = dma.hbm_to_vmem [thread:$0]  %s1, 8192, %s17, [#allocation4], 256, 256, 16
    $region9: #{attention_forward.6} parent=1 // pred_fallthru
      _
    // Predicated region
    $region10: #{attention_forward.6} parent=1 // pred_check
      _
    $region11: #{attention_forward.6} parent=1 // pred_check_branch
      %24 = sbr.rel (0) target = $region13
    $region12: #{attention_forward.6} parent=1 // pred_region
      _
    $region13: #{attention_forward.6} parent=1 // pred_fallthru
      _
    // Predicated region
    $region14: #{attention_forward.6} parent=1 // pred_check
      _
    $region15: #{attention_forward.6} parent=1 // pred_check_branch
      %26 = sbr.rel (0) target = $region17
    $region16: #{attention_forward.6} parent=1 // pred_region
      %27 = dma.done [#allocation4], 8192
    $region17: #{attention_forward.6} parent=1 // pred_fallthru
      _
    %p28 = scmp.eq.s32.totalorder 0, 0
    // Predicated region
    $region18: #{attention_forward.6} parent=1 // pred_check
      %p29 = pneg %p28
    $region19: #{attention_forward.6} parent=1 // pred_check_branch
      %31 = sbr.rel (%p29) target = $region21
    $region20: #{attention_forward.6} parent=1 // pred_region
      %32 = vst [vmem:[#allocation2] sm:$0xff] 0.0
      %33 = vst [vmem:[#allocation2 + $0x8] sm:$0xff] 0.0
      %34 = vst [vmem:[#allocation2 + $0x10] sm:$0xff] 0.0
      %35 = vst [vmem:[#allocation2 + $0x18] sm:$0xff] 0.0
    $region21: #{attention_forward.6} parent=1 // pred_fallthru
      _
    %v36 = vld [vmem:[#allocation2] sm:$0xff]
    %v37 = vld [vmem:[#allocation2 + $0x8] sm:$0xff]
    %v38 = vld [vmem:[#allocation2 + $0x10] sm:$0xff]
    %v39 = vld [vmem:[#allocation2 + $0x18] sm:$0xff]
    %v40 = vld [vmem:[%s0] sm:$0xff]
    %v41 = vld [vmem:[%s0 + $0x8] sm:$0xff]
    %v42 = vld [vmem:[%s0 + $0x10] sm:$0xff]
    %v43 = vld [vmem:[%s0 + $0x18] sm:$0xff]
    %v44 = vld [vmem:[#allocation3] sm:$0xff]
    %v45 = vld [vmem:[#allocation3 + $0x8] sm:$0xff]
    %v46 = vld [vmem:[#allocation3 + $0x10] sm:$0xff]
    %v47 = vld [vmem:[#allocation3 + $0x18] sm:$0xff]
    %v48 = vld [vmem:[#allocation3 + $0x20] sm:$0xff]
    %v49 = vld [vmem:[#allocation3 + $0x28] sm:$0xff]
    %v50 = vld [vmem:[#allocation3 + $0x30] sm:$0xff]
    %v51 = vld [vmem:[#allocation3 + $0x38] sm:$0xff]
    %v52 = vld [vmem:[#allocation3 + $0x40] sm:$0xff]
    %v53 = vld [vmem:[#allocation3 + $0x48] sm:$0xff]
    %v54 = vld [vmem:[#allocation3 + $0x50] sm:$0xff]
    %v55 = vld [vmem:[#allocation3 + $0x58] sm:$0xff]
    %v56 = vld [vmem:[#allocation3 + $0x60] sm:$0xff]
    %v57 = vld [vmem:[#allocation3 + $0x68] sm:$0xff]
    %v58 = vld [vmem:[#allocation3 + $0x70] sm:$0xff]
    %v59 = vld [vmem:[#allocation3 + $0x78] sm:$0xff]
    %v60 = vld [vmem:[#allocation3 + $0x80] sm:$0xff]
    %v61 = vld [vmem:[#allocation3 + $0x88] sm:$0xff]
    %v62 = vld [vmem:[#allocation3 + $0x90] sm:$0xff]
    %v63 = vld [vmem:[#allocation3 + $0x98] sm:$0xff]
    %v64 = vld [vmem:[#allocation3 + $0xa0] sm:$0xff]
    %v65 = vld [vmem:[#allocation3 + $0xa8] sm:$0xff]
    %v66 = vld [vmem:[#allocation3 + $0xb0] sm:$0xff]
    %v67 = vld [vmem:[#allocation3 + $0xb8] sm:$0xff]
    %v68 = vld [vmem:[#allocation3 + $0xc0] sm:$0xff]
    %v69 = vld [vmem:[#allocation3 + $0xc8] sm:$0xff]
    %v70 = vld [vmem:[#allocation3 + $0xd0] sm:$0xff]
    %v71 = vld [vmem:[#allocation3 + $0xd8] sm:$0xff]
    %v72 = vld [vmem:[#allocation3 + $0xe0] sm:$0xff]
    %v73 = vld [vmem:[#allocation3 + $0xe8] sm:$0xff]
    %v74 = vld [vmem:[#allocation3 + $0xf0] sm:$0xff]
    %v75 = vld [vmem:[#allocation3 + $0xf8] sm:$0xff]
    %v76 = vld [vmem:[#allocation3 + $0x100] sm:$0xff]
    %v77 = vld [vmem:[#allocation3 + $0x108] sm:$0xff]
    %v78 = vld [vmem:[#allocation3 + $0x110] sm:$0xff]
    %v79 = vld [vmem:[#allocation3 + $0x118] sm:$0xff]
    %v80 = vld [vmem:[#allocation3 + $0x120] sm:$0xff]
    %v81 = vld [vmem:[#allocation3 + $0x128] sm:$0xff]
    %v82 = vld [vmem:[#allocation3 + $0x130] sm:$0xff]
    %v83 = vld [vmem:[#allocation3 + $0x138] sm:$0xff]
    %v84 = vld [vmem:[#allocation3 + $0x140] sm:$0xff]
    %v85 = vld [vmem:[#allocation3 + $0x148] sm:$0xff]
    %v86 = vld [vmem:[#allocation3 + $0x150] sm:$0xff]
    %v87 = vld [vmem:[#allocation3 + $0x158] sm:$0xff]
    %v88 = vld [vmem:[#allocation3 + $0x160] sm:$0xff]
    %v89 = vld [vmem:[#allocation3 + $0x168] sm:$0xff]
    %v90 = vld [vmem:[#allocation3 + $0x170] sm:$0xff]
    %v91 = vld [vmem:[#allocation3 + $0x178] sm:$0xff]
    %v92 = vld [vmem:[#allocation3 + $0x180] sm:$0xff]
    %v93 = vld [vmem:[#allocation3 + $0x188] sm:$0xff]
    %v94 = vld [vmem:[#allocation3 + $0x190] sm:$0xff]
    %v95 = vld [vmem:[#allocation3 + $0x198] sm:$0xff]
    %v96 = vld [vmem:[#allocation3 + $0x1a0] sm:$0xff]
    %v97 = vld [vmem:[#allocation3 + $0x1a8] sm:$0xff]
    %v98 = vld [vmem:[#allocation3 + $0x1b0] sm:$0xff]
    %v99 = vld [vmem:[#allocation3 + $0x1b8] sm:$0xff]
    %v100 = vld [vmem:[#allocation3 + $0x1c0] sm:$0xff]
    %v101 = vld [vmem:[#allocation3 + $0x1c8] sm:$0xff]
    %v102 = vld [vmem:[#allocation3 + $0x1d0] sm:$0xff]
    %v103 = vld [vmem:[#allocation3 + $0x1d8] sm:$0xff]
    %v104 = vld [vmem:[#allocation3 + $0x1e0] sm:$0xff]
    %v105 = vld [vmem:[#allocation3 + $0x1e8] sm:$0xff]
    %v106 = vld [vmem:[#allocation3 + $0x1f0] sm:$0xff]
    %v107 = vld [vmem:[#allocation3 + $0x1f8] sm:$0xff]
    %108 = vmatprep.subr.mxu0 %v45
    %109 = vmatpush1.msra.mxu0 %v44
    %110 = vmatprep.subr.mxu0 %v47
    %111 = vmatpush1.msra.mxu0 %v46
    %112 = vmatprep.subr.mxu0 %v49
    %113 = vmatpush1.msra.mxu0 %v48
    %114 = vmatprep.subr.mxu0 %v51
    %115 = vmatpush1.msra.mxu0 %v50
    %116 = vmatprep.subr.mxu0 %v53
    %117 = vmatpush1.msra.mxu0 %v52
    %118 = vmatprep.subr.mxu0 %v55
    %119 = vmatpush1.msra.mxu0 %v54
    %120 = vmatprep.subr.mxu0 %v57
    %121 = vmatpush1.msra.mxu0 %v56
    %122 = vmatprep.subr.mxu0 %v59
    %123 = vmatpush1.msra.mxu0 %v58
    %124 = vmatprep.subr.mxu0 %v61
    %125 = vmatpush1.msra.mxu0 %v60
    %126 = vmatprep.subr.mxu0 %v63
    %127 = vmatpush1.msra.mxu0 %v62
    %128 = vmatprep.subr.mxu0 %v65
    %129 = vmatpush1.msra.mxu0 %v64
    %130 = vmatprep.subr.mxu0 %v67
    %131 = vmatpush1.msra.mxu0 %v66
    %132 = vmatprep.subr.mxu0 %v69
    %133 = vmatpush1.msra.mxu0 %v68
    %134 = vmatprep.subr.mxu0 %v71
    %135 = vmatpush1.msra.mxu0 %v70
    %136 = vmatprep.subr.mxu0 %v73
    %137 = vmatpush1.msra.mxu0 %v72
    %138 = vmatprep.subr.mxu0 %v75
    %139 = vmatpush1.msra.mxu0 %v74
    %140 = vmatprep.subr.mxu0 %v77
    %141 = vmatpush1.msra.mxu0 %v76
    %142 = vmatprep.subr.mxu0 %v79
    %143 = vmatpush1.msra.mxu0 %v78
    %144 = vmatprep.subr.mxu0 %v81
    %145 = vmatpush1.msra.mxu0 %v80
    %146 = vmatprep.subr.mxu0 %v83
    %147 = vmatpush1.msra.mxu0 %v82
    %148 = vmatprep.subr.mxu0 %v85
    %149 = vmatpush1.msra.mxu0 %v84
    %150 = vmatprep.subr.mxu0 %v87
    %151 = vmatpush1.msra.mxu0 %v86
    %152 = vmatprep.subr.mxu0 %v89
    %153 = vmatpush1.msra.mxu0 %v88
    %154 = vmatprep.subr.mxu0 %v91
    %155 = vmatpush1.msra.mxu0 %v90
    %156 = vmatprep.subr.mxu0 %v93
    %157 = vmatpush1.msra.mxu0 %v92
    %158 = vmatprep.subr.mxu0 %v95
    %159 = vmatpush1.msra.mxu0 %v94
    %160 = vmatprep.subr.mxu0 %v97
    %161 = vmatpush1.msra.mxu0 %v96
    %162 = vmatprep.subr.mxu0 %v99
    %163 = vmatpush1.msra.mxu0 %v98
    %164 = vmatprep.subr.mxu0 %v101
    %165 = vmatpush1.msra.mxu0 %v100
    %166 = vmatprep.subr.mxu0 %v103
    %167 = vmatpush1.msra.mxu0 %v102
    %168 = vmatprep.subr.mxu0 %v105
    %169 = vmatpush1.msra.mxu0 %v104
    %170 = vmatprep.subr.mxu0 %v107
    %171 = vmatpush1.msra.mxu0 %v106
    %172 = vmatprep.mubr.f32.mxu0 %v41
    %173 = vmatmul.mubr.f32.gmra.mrb[0].mxu0 %v40
    %v174 = vpop.f32.mrb[0].mxu0
    %v175 = vadd.f32 0.0, %v174
    %v176 = vpop.f32.mrb[0].mxu0
    %v177 = vadd.f32 0.0, %v176
    %178 = vmatprep.mubr.f32.mxu0 %v43
    %179 = vmatmul.mubr.f32.gmra.mrb[0].mxu0 %v42
    %v180 = vpop.f32.mrb[0].mxu0
    %v181 = vadd.f32 0.0, %v180
    %v182 = vpop.f32.mrb[0].mxu0
    %v183 = vadd.f32 0.0, %v182
    %184 = vdwg.mxu0
    %v185 = vadd.f32 %v36, %v175
    %v186 = vadd.f32 %v37, %v177
    %v187 = vadd.f32 %v38, %v181
    %v188 = vadd.f32 %v39, %v183
    %189 = vst [vmem:[#allocation2] sm:$0xff] %v185
    %190 = vst [vmem:[#allocation2 + $0x8] sm:$0xff] %v186
    %191 = vst [vmem:[#allocation2 + $0x10] sm:$0xff] %v187
    %192 = vst [vmem:[#allocation2 + $0x18] sm:$0xff] %v188
    // Predicated region
    $region22: #{attention_forward.6} parent=1 // pred_check
      %p193 = pneg %p28
    $region23: #{attention_forward.6} parent=1 // pred_check_branch
      %195 = sbr.rel (%p193) target = $region25
    $region24: #{attention_forward.6} parent=1 // pred_region
      %v196 = vld [vmem:[#allocation2] sm:$0xff]
      %v197 = vld [vmem:[#allocation2 + $0x8] sm:$0xff]
      %v198 = vld [vmem:[#allocation2 + $0x10] sm:$0xff]
      %v199 = vld [vmem:[#allocation2 + $0x18] sm:$0xff]
      %v200 = vld [vmem:[%s2] sm:$0x3]
      %v202 = vlaneseq
      %v203 = vshrl.u32 %v202, 7
      %v204 = vsub.s32 0, %v203
      %v205 = vrot.slane %v200, %v204
      %v206 = vlaneseq
      %v207 = vshrl.u32 %v206, 7
      %v208 = vsub.s32 1, %v207
      %v209 = vrot.slane %v200, %v208
      %v212 = vadd.f32 %v196, %v205
      %v213 = vadd.f32 %v197, %v209
      %v214 = vadd.f32 %v198, %v205
      %v215 = vadd.f32 %v199, %v209
      %216 = vst [vmem:[%s3] sm:$0xff] %v212
      %217 = vst [vmem:[%s3 + $0x8] sm:$0xff] %v213
      %218 = vst [vmem:[%s3 + $0x10] sm:$0xff] %v214
      %219 = vst [vmem:[%s3 + $0x18] sm:$0xff] %v215
    $region25: #{attention_forward.6} parent=1 // pred_fallthru
      _
    // Predicated region
    $region26: #{attention_forward.6} parent=1 // pred_check
      _
    $region27: #{attention_forward.6} parent=1 // pred_check_branch
      %221 = sbr.rel (0) target = $region29
    $region28: #{attention_forward.6} parent=1 // pred_region
      _
    $region29: #{attention_forward.6} parent=1 // pred_fallthru
      _
    // Predicated region
    $region30: #{attention_forward.6} parent=1 // pred_check
      _
    $region31: #{attention_forward.6} parent=1 // pred_check_branch
      %223 = sbr.rel (0) target = $region33
    $region32: #{attention_forward.6} parent=1 // pred_region
      _
    $region33: #{attention_forward.6} parent=1 // pred_fallthru
      _
    %224 = vsyncpa [#allocation4], 1

// kernel: attention_forward.7
$region0: #{attention_forward.7}
  #allocation0 [shape = 'u32[]', space=smem, size = 0x4, offset = 0x4, fixed_abs, tag = 'smem constant byte address 0x4 - core index']
  #allocation1 [shape = 'u32[144,128]{1,0:T(1,128)}', space=vmem, size = 0x12000, scoped, tag = 'internal scratch']
  #allocation2 [shape = 'f32[16,256]{1,0:T(8,128)}', space=vmem, size = 0x4000, scoped, tag = 'scratch operand']
  %s0 = inlined_call_operand.vmem [shape: f32[16,256], index: 0, kind: input, shape index: {}]
  %s1 = inlined_call_operand.vmem [shape: f32[256,256], index: 1, kind: input, shape index: {}]
  %s2 = inlined_call_operand.vmem [shape: f32[1,256], index: 2, kind: input, shape index: {}]
  %s3 = inlined_call_operand.vmem [shape: f32[16,256], index: 3, kind: output, shape index: {}]
  %s4 = sld [smem:[#allocation0]]
  $region30: #{attention_forward.7} parent=0
    _
  %s6 = ssub.s32 1, %s4
  %s7 = scalar_select 0, %s6, %s4
  // Predicated region
  $region2: #{attention_forward.7} parent=0 // pred_check
    _
  $region3: #{attention_forward.7} parent=0 // pred_check_branch
    %9 = sbr.rel (0) target = $region5
  $region4: #{attention_forward.7} parent=0 // pred_region
    _
  $region5: #{attention_forward.7} parent=0 // pred_fallthru
    _
  // Predicated region
  $region6: #{attention_forward.7} parent=0 // pred_check
    _
  $region7: #{attention_forward.7} parent=0 // pred_check_branch
    %11 = sbr.rel (0) target = $region9
  $region8: #{attention_forward.7} parent=0 // pred_region
    _
  $region9: #{attention_forward.7} parent=0 // pred_fallthru
    _
  // Predicated region
  $region10: #{attention_forward.7} parent=0 // pred_check
    _
  $region11: #{attention_forward.7} parent=0 // pred_check_branch
    %13 = sbr.rel (0) target = $region13
  $region12: #{attention_forward.7} parent=0 // pred_region
    _
  $region13: #{attention_forward.7} parent=0 // pred_fallthru
    _
  %p14 = scmp.eq.s32.totalorder 0, 0
  // Predicated region
  $region14: #{attention_forward.7} parent=0 // pred_check
    %p15 = pneg %p14
  $region15: #{attention_forward.7} parent=0 // pred_check_branch
    %17 = sbr.rel (%p15) target = $region17
  $region16: #{attention_forward.7} parent=0 // pred_region
    %18 = vst [vmem:[#allocation2] sm:$0xff] 0.0
    %19 = vst [vmem:[#allocation2 + $0x8] sm:$0xff] 0.0
    %20 = vst [vmem:[#allocation2 + $0x10] sm:$0xff] 0.0
    %21 = vst [vmem:[#allocation2 + $0x18] sm:$0xff] 0.0
  $region17: #{attention_forward.7} parent=0 // pred_fallthru
    _
  %v22 = vld [vmem:[#allocation2] sm:$0xff]
  %v23 = vld [vmem:[#allocation2 + $0x8] sm:$0xff]
  %v24 = vld [vmem:[#allocation2 + $0x10] sm:$0xff]
  %v25 = vld [vmem:[#allocation2 + $0x18] sm:$0xff]
  %v26 = vld [vmem:[%s0] sm:$0xff]
  %v27 = vld [vmem:[%s0 + $0x8] sm:$0xff]
  %v28 = vld [vmem:[%s0 + $0x10] sm:$0xff]
  %v29 = vld [vmem:[%s0 + $0x18] sm:$0xff]
  %v30 = vld [vmem:[%s1] sm:$0xff]
  %v31 = vld [vmem:[%s1 + $0x8] sm:$0xff]
  %v32 = vld [vmem:[%s1 + $0x10] sm:$0xff]
  %v33 = vld [vmem:[%s1 + $0x18] sm:$0xff]
  %v34 = vld [vmem:[%s1 + $0x20] sm:$0xff]
  %v35 = vld [vmem:[%s1 + $0x28] sm:$0xff]
  %v36 = vld [vmem:[%s1 + $0x30] sm:$0xff]
  %v37 = vld [vmem:[%s1 + $0x38] sm:$0xff]
  %v38 = vld [vmem:[%s1 + $0x40] sm:$0xff]
  %v39 = vld [vmem:[%s1 + $0x48] sm:$0xff]
  %v40 = vld [vmem:[%s1 + $0x50] sm:$0xff]
  %v41 = vld [vmem:[%s1 + $0x58] sm:$0xff]
  %v42 = vld [vmem:[%s1 + $0x60] sm:$0xff]
  %v43 = vld [vmem:[%s1 + $0x68] sm:$0xff]
  %v44 = vld [vmem:[%s1 + $0x70] sm:$0xff]
  %v45 = vld [vmem:[%s1 + $0x78] sm:$0xff]
  %v46 = vld [vmem:[%s1 + $0x80] sm:$0xff]
  %v47 = vld [vmem:[%s1 + $0x88] sm:$0xff]
  %v48 = vld [vmem:[%s1 + $0x90] sm:$0xff]
  %v49 = vld [vmem:[%s1 + $0x98] sm:$0xff]
  %v50 = vld [vmem:[%s1 + $0xa0] sm:$0xff]
  %v51 = vld [vmem:[%s1 + $0xa8] sm:$0xff]
  %v52 = vld [vmem:[%s1 + $0xb0] sm:$0xff]
  %v53 = vld [vmem:[%s1 + $0xb8] sm:$0xff]
  %v54 = vld [vmem:[%s1 + $0xc0] sm:$0xff]
  %v55 = vld [vmem:[%s1 + $0xc8] sm:$0xff]
  %v56 = vld [vmem:[%s1 + $0xd0] sm:$0xff]
  %v57 = vld [vmem:[%s1 + $0xd8] sm:$0xff]
  %v58 = vld [vmem:[%s1 + $0xe0] sm:$0xff]
  %v59 = vld [vmem:[%s1 + $0xe8] sm:$0xff]
  %v60 = vld [vmem:[%s1 + $0xf0] sm:$0xff]
  %v61 = vld [vmem:[%s1 + $0xf8] sm:$0xff]
  %v62 = vld [vmem:[%s1 + $0x100] sm:$0xff]
  %v63 = vld [vmem:[%s1 + $0x108] sm:$0xff]
  %v64 = vld [vmem:[%s1 + $0x110] sm:$0xff]
  %v65 = vld [vmem:[%s1 + $0x118] sm:$0xff]
  %v66 = vld [vmem:[%s1 + $0x120] sm:$0xff]
  %v67 = vld [vmem:[%s1 + $0x128] sm:$0xff]
  %v68 = vld [vmem:[%s1 + $0x130] sm:$0xff]
  %v69 = vld [vmem:[%s1 + $0x138] sm:$0xff]
  %v70 = vld [vmem:[%s1 + $0x140] sm:$0xff]
  %v71 = vld [vmem:[%s1 + $0x148] sm:$0xff]
  %v72 = vld [vmem:[%s1 + $0x150] sm:$0xff]
  %v73 = vld [vmem:[%s1 + $0x158] sm:$0xff]
  %v74 = vld [vmem:[%s1 + $0x160] sm:$0xff]
  %v75 = vld [vmem:[%s1 + $0x168] sm:$0xff]
  %v76 = vld [vmem:[%s1 + $0x170] sm:$0xff]
  %v77 = vld [vmem:[%s1 + $0x178] sm:$0xff]
  %v78 = vld [vmem:[%s1 + $0x180] sm:$0xff]
  %v79 = vld [vmem:[%s1 + $0x188] sm:$0xff]
  %v80 = vld [vmem:[%s1 + $0x190] sm:$0xff]
  %v81 = vld [vmem:[%s1 + $0x198] sm:$0xff]
  %v82 = vld [vmem:[%s1 + $0x1a0] sm:$0xff]
  %v83 = vld [vmem:[%s1 + $0x1a8] sm:$0xff]
  %v84 = vld [vmem:[%s1 + $0x1b0] sm:$0xff]
  %v85 = vld [vmem:[%s1 + $0x1b8] sm:$0xff]
  %v86 = vld [vmem:[%s1 + $0x1c0] sm:$0xff]
  %v87 = vld [vmem:[%s1 + $0x1c8] sm:$0xff]
  %v88 = vld [vmem:[%s1 + $0x1d0] sm:$0xff]
  %v89 = vld [vmem:[%s1 + $0x1d8] sm:$0xff]
  %v90 = vld [vmem:[%s1 + $0x1e0] sm:$0xff]
  %v91 = vld [vmem:[%s1 + $0x1e8] sm:$0xff]
  %v92 = vld [vmem:[%s1 + $0x1f0] sm:$0xff]
  %v93 = vld [vmem:[%s1 + $0x1f8] sm:$0xff]
  %94 = vmatprep.subr.mxu0 %v31
  %95 = vmatpush1.msra.mxu0 %v30
  %96 = vmatprep.subr.mxu0 %v33
  %97 = vmatpush1.msra.mxu0 %v32
  %98 = vmatprep.subr.mxu0 %v35
  %99 = vmatpush1.msra.mxu0 %v34
  %100 = vmatprep.subr.mxu0 %v37
  %101 = vmatpush1.msra.mxu0 %v36
  %102 = vmatprep.subr.mxu0 %v39
  %103 = vmatpush1.msra.mxu0 %v38
  %104 = vmatprep.subr.mxu0 %v41
  %105 = vmatpush1.msra.mxu0 %v40
  %106 = vmatprep.subr.mxu0 %v43
  %107 = vmatpush1.msra.mxu0 %v42
  %108 = vmatprep.subr.mxu0 %v45
  %109 = vmatpush1.msra.mxu0 %v44
  %110 = vmatprep.subr.mxu0 %v47
  %111 = vmatpush1.msra.mxu0 %v46
  %112 = vmatprep.subr.mxu0 %v49
  %113 = vmatpush1.msra.mxu0 %v48
  %114 = vmatprep.subr.mxu0 %v51
  %115 = vmatpush1.msra.mxu0 %v50
  %116 = vmatprep.subr.mxu0 %v53
  %117 = vmatpush1.msra.mxu0 %v52
  %118 = vmatprep.subr.mxu0 %v55
  %119 = vmatpush1.msra.mxu0 %v54
  %120 = vmatprep.subr.mxu0 %v57
  %121 = vmatpush1.msra.mxu0 %v56
  %122 = vmatprep.subr.mxu0 %v59
  %123 = vmatpush1.msra.mxu0 %v58
  %124 = vmatprep.subr.mxu0 %v61
  %125 = vmatpush1.msra.mxu0 %v60
  %126 = vmatprep.subr.mxu0 %v63
  %127 = vmatpush1.msra.mxu0 %v62
  %128 = vmatprep.subr.mxu0 %v65
  %129 = vmatpush1.msra.mxu0 %v64
  %130 = vmatprep.subr.mxu0 %v67
  %131 = vmatpush1.msra.mxu0 %v66
  %132 = vmatprep.subr.mxu0 %v69
  %133 = vmatpush1.msra.mxu0 %v68
  %134 = vmatprep.subr.mxu0 %v71
  %135 = vmatpush1.msra.mxu0 %v70
  %136 = vmatprep.subr.mxu0 %v73
  %137 = vmatpush1.msra.mxu0 %v72
  %138 = vmatprep.subr.mxu0 %v75
  %139 = vmatpush1.msra.mxu0 %v74
  %140 = vmatprep.subr.mxu0 %v77
  %141 = vmatpush1.msra.mxu0 %v76
  %142 = vmatprep.subr.mxu0 %v79
  %143 = vmatpush1.msra.mxu0 %v78
  %144 = vmatprep.subr.mxu0 %v81
  %145 = vmatpush1.msra.mxu0 %v80
  %146 = vmatprep.subr.mxu0 %v83
  %147 = vmatpush1.msra.mxu0 %v82
  %148 = vmatprep.subr.mxu0 %v85
  %149 = vmatpush1.msra.mxu0 %v84
  %150 = vmatprep.subr.mxu0 %v87
  %151 = vmatpush1.msra.mxu0 %v86
  %152 = vmatprep.subr.mxu0 %v89
  %153 = vmatpush1.msra.mxu0 %v88
  %154 = vmatprep.subr.mxu0 %v91
  %155 = vmatpush1.msra.mxu0 %v90
  %156 = vmatprep.subr.mxu0 %v93
  %157 = vmatpush1.msra.mxu0 %v92
  %158 = vmatprep.mubr.f32.mxu0 %v27
  %159 = vmatmul.mubr.f32.gmra.mrb[0].mxu0 %v26
  %v160 = vpop.f32.mrb[0].mxu0
  %v161 = vadd.f32 0.0, %v160
  %v162 = vpop.f32.mrb[0].mxu0
  %v163 = vadd.f32 0.0, %v162
  %164 = vmatprep.mubr.f32.mxu0 %v29
  %165 = vmatmul.mubr.f32.gmra.mrb[0].mxu0 %v28
  %v166 = vpop.f32.mrb[0].mxu0
  %v167 = vadd.f32 0.0, %v166
  %v168 = vpop.f32.mrb[0].mxu0
  %v169 = vadd.f32 0.0, %v168
  %170 = vdwg.mxu0
  %v171 = vadd.f32 %v22, %v161
  %v172 = vadd.f32 %v23, %v163
  %v173 = vadd.f32 %v24, %v167
  %v174 = vadd.f32 %v25, %v169
  %175 = vst [vmem:[#allocation2] sm:$0xff] %v171
  %176 = vst [vmem:[#allocation2 + $0x8] sm:$0xff] %v172
  %177 = vst [vmem:[#allocation2 + $0x10] sm:$0xff] %v173
  %178 = vst [vmem:[#allocation2 + $0x18] sm:$0xff] %v174
  // Predicated region
  $region18: #{attention_forward.7} parent=0 // pred_check
    %p179 = pneg %p14
  $region19: #{attention_forward.7} parent=0 // pred_check_branch
    %181 = sbr.rel (%p179) target = $region21
  $region20: #{attention_forward.7} parent=0 // pred_region
    %v182 = vld [vmem:[#allocation2] sm:$0xff]
    %v183 = vld [vmem:[#allocation2 + $0x8] sm:$0xff]
    %v184 = vld [vmem:[#allocation2 + $0x10] sm:$0xff]
    %v185 = vld [vmem:[#allocation2 + $0x18] sm:$0xff]
    %v186 = vld [vmem:[%s2] sm:$0x3]
    %v188 = vlaneseq
    %v189 = vshrl.u32 %v188, 7
    %v190 = vsub.s32 0, %v189
    %v191 = vrot.slane %v186, %v190
    %v192 = vlaneseq
    %v193 = vshrl.u32 %v192, 7
    %v194 = vsub.s32 1, %v193
    %v195 = vrot.slane %v186, %v194
    %v198 = vadd.f32 %v182, %v191
    %v199 = vadd.f32 %v183, %v195
    %v200 = vadd.f32 %v184, %v191
    %v201 = vadd.f32 %v185, %v195
    %202 = vst [vmem:[%s3] sm:$0xff] %v198
    %203 = vst [vmem:[%s3 + $0x8] sm:$0xff] %v199
    %204 = vst [vmem:[%s3 + $0x10] sm:$0xff] %v200
    %205 = vst [vmem:[%s3 + $0x18] sm:$0xff] %v201
  $region21: #{attention_forward.7} parent=0 // pred_fallthru
    _
  // Predicated region
  $region22: #{attention_forward.7} parent=0 // pred_check
    _
  $region23: #{attention_forward.7} parent=0 // pred_check_branch
    %207 = sbr.rel (0) target = $region25
  $region24: #{attention_forward.7} parent=0 // pred_region
    _
  $region25: #{attention_forward.7} parent=0 // pred_fallthru
    _
  // Predicated region
  $region26: #{attention_forward.7} parent=0 // pred_check
    _
  $region27: #{attention_forward.7} parent=0 // pred_check_branch
    %209 = sbr.rel (0) target = $region29
  $region28: #{attention_forward.7} parent=0 // pred_region
    _
  $region29: #{attention_forward.7} parent=0 // pred_fallthru
    _

// kernel: attention_forward.8
$region0: #{attention_forward.8}
  #allocation0 [shape = 'u32[]', space=smem, size = 0x4, offset = 0x4, fixed_abs, tag = 'smem constant byte address 0x4 - core index']
  #allocation1 [shape = 'u32[144,128]{1,0:T(1,128)}', space=vmem, size = 0x12000, scoped, tag = 'internal scratch']
  #allocation2 [shape = 'f32[8,1]{1,0:T(8,128)}', space=vmem, size = 0x1000, scoped, tag = 'scratch operand']
  #allocation3 [shape = 'f32[8,1]{1,0:T(8,128)}', space=vmem, size = 0x1000, scoped, tag = 'scratch operand']
  #allocation4 [shape = 'f32[8,64]{1,0:T(8,128)}', space=vmem, size = 0x1000, scoped, tag = 'scratch operand']
  %s0 = inlined_call_operand.vmem [shape: f32[2,4,8,64], index: 0, kind: input, shape index: {}]
  %s1 = inlined_call_operand.vmem [shape: f32[2,4,8,64], index: 1, kind: input, shape index: {}]
  %s2 = inlined_call_operand.vmem [shape: f32[2,4,8,64], index: 2, kind: input, shape index: {}]
  %s3 = inlined_call_operand.vmem [shape: f32[2,8,8], index: 3, kind: input, shape index: {}]
  %s4 = inlined_call_operand.vmem [shape: f32[2,4,8,64], index: 4, kind: output, shape index: {}]
  %s5 = sld [smem:[#allocation0]]
  $region57: #{attention_forward.8} parent=0
    _
  %s7 = ssub.s32 1, %s5
  %s8 = scalar_select 0, %s7, %s5
  loop: start=0, step=1, limit=10
  $region2: #{attention_forward.8} parent=0 // loop_pre_header
    _
  $region3: #{attention_forward.8} parent=0 // loop_header
    %s10 = sphi 0, %s14
    %p11 = scmp.ge.s32.totalorder %s10, 10
    %s17 = sphi 0, %s43
    %s18 = sphi 0, %s39
    %s19 = sphi 0, %s35
    %s20 = sphi 0, %s31
    %s21 = sphi 0, %s17
    %s22 = sphi 0, %s18
    %s23 = sphi 0, %s19
    %s24 = sphi 0, %s20
    %s25 = sphi 0, %s21
    %s26 = sphi 0, %s22
    %s27 = sphi 0, %s23
    %s28 = sphi 0, %s24
    %s50 = sphi 0, %s52
    %s53 = sphi 0, %s50
    %s54 = sphi 0, %s53
    %s70 = sphi 0, %s54
    %s80 = sphi 0, %s82
    %s83 = sphi 0, %s80
    %s84 = sphi 0, %s83
    %s100 = sphi 0, %s84
    %s110 = sphi 0, %s112
    %s113 = sphi 0, %s110
    %s114 = sphi 0, %s113
    %s130 = sphi 0, %s114
    %s140 = sphi 0, %s142
    %s143 = sphi 0, %s140
    %s144 = sphi 0, %s143
    %s160 = sphi 0, %s144
    %s170 = sphi 0, %s172
    %s173 = sphi 0, %s170
    %s174 = sphi 0, %s173
    %s190 = sphi 0, %s174
  $region4: #{attention_forward.8} parent=0 // loop_header_branch
    %13 = sbr.rel (%p11) target = $region8
  $region5: #{attention_forward.8} parent=0 // loop_body
    %s15 = ssub.s32 %s10, 1
    %s16 = ssub.s32 %s10, 2
    %s29 = sadd.s32 1, %s20
    %p30 = scmp.ge.s32.totalorder %s29, 1
    %s31 = scalar_select %p30, 0, %s29
    %s32 = sadd.s32 1, %s19
    %s33 = scalar_select %p30, %s32, %s19
    %p34 = scmp.ge.s32.totalorder %s33, 1
    %s35 = scalar_select %p34, 0, %s33
    %s36 = sadd.s32 1, %s18
    %s37 = scalar_select %p34, %s36, %s18
    %p38 = scmp.ge.s32.totalorder %s37, 4
    %s39 = scalar_select %p38, 0, %s37
    %s40 = sadd.s32 1, %s17
    %s41 = scalar_select %p38, %s40, %s17
    %p42 = scmp.ge.s32.totalorder %s41, 2
    %s43 = scalar_select %p42, 0, %s41
    %s44 = ssub.s32 %s17, %s43
    %s45 = ssub.s32 %s18, %s39
    %s46 = sor.u32 %s44, %s45
    %s47 = ssub.s32 %s19, %s35
    %s48 = sor.u32 %s46, %s47
    %p49 = scmp.eq.s32.totalorder %s48, 0
    %s51 = sadd.s32 %s50, 1
    %s52 = scalar_select %p49, %s50, %s51
    %p55 = pneg %p49
    %p56 = scmp.eq.s32.totalorder %s10, 7
    %p57 = por %p55, %p56
    %p58 = scmp.ne.s32.totalorder %s50, %s53
    %p59 = scmp.eq.s32.totalorder %s10, 0
    %p60 = por %p58, %p59
    %p61 = scmp.ne.s32.totalorder %s50, %s53
    %p62 = scmp.eq.s32.totalorder %s15, 7
    %p63 = por %p61, %p62
    %p64 = scmp.ne.s32.totalorder %s53, %s54
    %p65 = scmp.eq.s32.totalorder %s15, 0
    %p66 = por %p64, %p65
    %p67 = scmp.ne.s32.totalorder %s53, %s54
    %p68 = scmp.eq.s32.totalorder %s16, 7
    %p69 = por %p67, %p68
    %p71 = scmp.ne.s32.totalorder %s54, %s70
    %p72 = scmp.eq.s32.totalorder %s16, 0
    %p73 = por %p71, %p72
    %s74 = ssub.s32 %s17, %s43
    %s75 = ssub.s32 %s18, %s39
    %s76 = sor.u32 %s74, %s75
    %s77 = ssub.s32 %s20, %s31
    %s78 = sor.u32 %s76, %s77
    %p79 = scmp.eq.s32.totalorder %s78, 0
    %s81 = sadd.s32 %s80, 1
    %s82 = scalar_select %p79, %s80, %s81
    %p85 = pneg %p79
    %p86 = scmp.eq.s32.totalorder %s10, 7
    %p87 = por %p85, %p86
    %p88 = scmp.ne.s32.totalorder %s80, %s83
    %p89 = scmp.eq.s32.totalorder %s10, 0
    %p90 = por %p88, %p89
    %p91 = scmp.ne.s32.totalorder %s80, %s83
    %p92 = scmp.eq.s32.totalorder %s15, 7
    %p93 = por %p91, %p92
    %p94 = scmp.ne.s32.totalorder %s83, %s84
    %p95 = scmp.eq.s32.totalorder %s15, 0
    %p96 = por %p94, %p95
    %p97 = scmp.ne.s32.totalorder %s83, %s84
    %p98 = scmp.eq.s32.totalorder %s16, 7
    %p99 = por %p97, %p98
    %p101 = scmp.ne.s32.totalorder %s84, %s100
    %p102 = scmp.eq.s32.totalorder %s16, 0
    %p103 = por %p101, %p102
    %s104 = ssub.s32 %s17, %s43
    %s105 = ssub.s32 %s18, %s39
    %s106 = sor.u32 %s104, %s105
    %s107 = ssub.s32 %s20, %s31
    %s108 = sor.u32 %s106, %s107
    %p109 = scmp.eq.s32.totalorder %s108, 0
    %s111 = sadd.s32 %s110, 1
    %s112 = scalar_select %p109, %s110, %s111
    %p115 = pneg %p109
    %p116 = scmp.eq.s32.totalorder %s10, 7
    %p117 = por %p115, %p116
    %p118 = scmp.ne.s32.totalorder %s110, %s113
    %p119 = scmp.eq.s32.totalorder %s10, 0
    %p120 = por %p118, %p119
    %p121 = scmp.ne.s32.totalorder %s110, %s113
    %p122 = scmp.eq.s32.totalorder %s15, 7
    %p123 = por %p121, %p122
    %p124 = scmp.ne.s32.totalorder %s113, %s114
    %p125 = scmp.eq.s32.totalorder %s15, 0
    %p126 = por %p124, %p125
    %p127 = scmp.ne.s32.totalorder %s113, %s114
    %p128 = scmp.eq.s32.totalorder %s16, 7
    %p129 = por %p127, %p128
    %p131 = scmp.ne.s32.totalorder %s114, %s130
    %p132 = scmp.eq.s32.totalorder %s16, 0
    %p133 = por %p131, %p132
    %s134 = ssub.s32 %s17, %s43
    %s135 = ssub.s32 %s19, %s35
    %s136 = sor.u32 %s134, %s135
    %s137 = ssub.s32 %s20, %s31
    %s138 = sor.u32 %s136, %s137
    %p139 = scmp.eq.s32.totalorder %s138, 0
    %s141 = sadd.s32 %s140, 1
    %s142 = scalar_select %p139, %s140, %s141
    %p145 = pneg %p139
    %p146 = scmp.eq.s32.totalorder %s10, 7
    %p147 = por %p145, %p146
    %p148 = scmp.ne.s32.totalorder %s140, %s143
    %p149 = scmp.eq.s32.totalorder %s10, 0
    %p150 = por %p148, %p149
    %p151 = scmp.ne.s32.totalorder %s140, %s143
    %p152 = scmp.eq.s32.totalorder %s15, 7
    %p153 = por %p151, %p152
    %p154 = scmp.ne.s32.totalorder %s143, %s144
    %p155 = scmp.eq.s32.totalorder %s15, 0
    %p156 = por %p154, %p155
    %p157 = scmp.ne.s32.totalorder %s143, %s144
    %p158 = scmp.eq.s32.totalorder %s16, 7
    %p159 = por %p157, %p158
    %p161 = scmp.ne.s32.totalorder %s144, %s160
    %p162 = scmp.eq.s32.totalorder %s16, 0
    %p163 = por %p161, %p162
    %s164 = ssub.s32 %s17, %s43
    %s165 = ssub.s32 %s18, %s39
    %s166 = sor.u32 %s164, %s165
    %s167 = ssub.s32 %s19, %s35
    %s168 = sor.u32 %s166, %s167
    %p169 = scmp.eq.s32.totalorder %s168, 0
    %s171 = sadd.s32 %s170, 1
    %s172 = scalar_select %p169, %s170, %s171
    %p175 = pneg %p169
    %p176 = scmp.eq.s32.totalorder %s10, 7
    %p177 = por %p175, %p176
    %p178 = scmp.ne.s32.totalorder %s170, %s173
    %p179 = scmp.eq.s32.totalorder %s10, 0
    %p180 = por %p178, %p179
    %p181 = scmp.ne.s32.totalorder %s170, %s173
    %p182 = scmp.eq.s32.totalorder %s15, 7
    %p183 = por %p181, %p182
    %p184 = scmp.ne.s32.totalorder %s173, %s174
    %p185 = scmp.eq.s32.totalorder %s15, 0
    %p186 = por %p184, %p185
    %p187 = scmp.ne.s32.totalorder %s173, %s174
    %p188 = scmp.eq.s32.totalorder %s16, 7
    %p189 = por %p187, %p188
    %p191 = scmp.ne.s32.totalorder %s174, %s190
    %p192 = scmp.eq.s32.totalorder %s16, 0
    %p193 = por %p191, %p192
    %p194 = scmp.le.s32.totalorder 1, %s10
    %p195 = scmp.lt.s32.totalorder %s10, 9
    %p196 = pnand %p194, %p195
    %p197 = pneg %p196
    // Predicated region
    $region9: #{attention_forward.8} parent=5 // pred_check
      _
    $region10: #{attention_forward.8} parent=5 // pred_check_branch
      %199 = sbr.rel (%p196) target = $region12
    $region11: #{attention_forward.8} parent=5 // pred_region
      %s200 = ssub.s32 %s10, 1
    $region12: #{attention_forward.8} parent=5 // pred_fallthru
      _
    %p201 = scmp.lt.s32.totalorder %s10, 8
    // Predicated region
    $region13: #{attention_forward.8} parent=5 // pred_check
      %p202 = pneg %p201
    $region14: #{attention_forward.8} parent=5 // pred_check_branch
      %204 = sbr.rel (%p202) target = $region16
    $region15: #{attention_forward.8} parent=5 // pred_region
      // Predicated region
      $region17: #{attention_forward.8} parent=15 // pred_check
        %p205 = pneg %p60
      $region18: #{attention_forward.8} parent=15 // pred_check_branch
        %207 = sbr.rel (%p205) target = $region20
      $region19: #{attention_forward.8} parent=15 // pred_region
        %p208 = scmp.lt.s32.totalorder %s17, 1
        %s209 = scalar_select %p208, %s17, 1
        %p210 = scmp.lt.s32.totalorder %s18, 3
        %s211 = scalar_select %p210, %s18, 3
        %p212 = scmp.lt.s32.totalorder %s19, 0
        %s213 = scalar_select %p212, %s19, 0
        %s214 = sadd.s32 %s213, %s211
        %s215 = smul.addr %s209, 4
        %s216 = sadd.s32 %s214, %s215
        %s217 = smul.addr %s216, 8
        %s218 = scalar_lea.vmem %s0, %s217
      $region20: #{attention_forward.8} parent=15 // pred_fallthru
        _
      // Predicated region
      $region21: #{attention_forward.8} parent=15 // pred_check
        %p219 = pneg %p90
      $region22: #{attention_forward.8} parent=15 // pred_check_branch
        %221 = sbr.rel (%p219) target = $region24
      $region23: #{attention_forward.8} parent=15 // pred_region
        %p222 = scmp.lt.s32.totalorder %s17, 1
        %s223 = scalar_select %p222, %s17, 1
        %p224 = scmp.lt.s32.totalorder %s18, 3
        %s225 = scalar_select %p224, %s18, 3
        %p226 = scmp.lt.s32.totalorder %s20, 0
        %s227 = scalar_select %p226, %s20, 0
        %s228 = sadd.s32 %s227, %s225
        %s229 = smul.addr %s223, 4
        %s230 = sadd.s32 %s228, %s229
        %s231 = smul.addr %s230, 8
        %s232 = scalar_lea.vmem %s1, %s231
      $region24: #{attention_forward.8} parent=15 // pred_fallthru
        _
      // Predicated region
      $region25: #{attention_forward.8} parent=15 // pred_check
        %p233 = pneg %p120
      $region26: #{attention_forward.8} parent=15 // pred_check_branch
        %235 = sbr.rel (%p233) target = $region28
      $region27: #{attention_forward.8} parent=15 // pred_region
        %p236 = scmp.lt.s32.totalorder %s17, 1
        %s237 = scalar_select %p236, %s17, 1
        %p238 = scmp.lt.s32.totalorder %s18, 3
        %s239 = scalar_select %p238, %s18, 3
        %p240 = scmp.lt.s32.totalorder %s20, 0
        %s241 = scalar_select %p240, %s20, 0
        %s242 = sadd.s32 %s241, %s239
        %s243 = smul.addr %s237, 4
        %s244 = sadd.s32 %s242, %s243
        %s245 = smul.addr %s244, 8
        %s246 = scalar_lea.vmem %s2, %s245
      $region28: #{attention_forward.8} parent=15 // pred_fallthru
        _
      // Predicated region
      $region29: #{attention_forward.8} parent=15 // pred_check
        %p247 = pneg %p150
      $region30: #{attention_forward.8} parent=15 // pred_check_branch
        %249 = sbr.rel (%p247) target = $region32
      $region31: #{attention_forward.8} parent=15 // pred_region
        %p250 = scmp.lt.s32.totalorder %s17, 1
        %s251 = scalar_select %p250, %s17, 1
        %p252 = scmp.lt.s32.totalorder %s19, 0
        %s253 = scalar_select %p252, %s19, 0
        %p254 = scmp.lt.s32.totalorder %s20, 0
        %s255 = scalar_select %p254, %s20, 0
        %s256 = sadd.s32 %s255, %s253
        %s257 = sadd.s32 %s256, %s251
        %s258 = smul.addr %s257, 8
        %s259 = scalar_lea.vmem %s3, %s258
      $region32: #{attention_forward.8} parent=15 // pred_fallthru
        _
    $region16: #{attention_forward.8} parent=5 // pred_fallthru
      _
    %p260 = scmp.le.s32.totalorder 1, %s10
    %p261 = scmp.lt.s32.totalorder %s10, 9
    %p262 = pnand %p260, %p261
    %p263 = pneg %p262
    // Predicated region
    $region33: #{attention_forward.8} parent=5 // pred_check
      _
    $region34: #{attention_forward.8} parent=5 // pred_check_branch
      %265 = sbr.rel (%p262) target = $region36
    $region35: #{attention_forward.8} parent=5 // pred_region
      %s266 = ssub.s32 %s10, 1
      %p267 = scmp.lt.s32.totalorder %s21, 1
      %s268 = scalar_select %p267, %s21, 1
      %p269 = scmp.lt.s32.totalorder %s22, 3
      %s270 = scalar_select %p269, %s22, 3
      %p271 = scmp.lt.s32.totalorder %s23, 0
      %s272 = scalar_select %p271, %s23, 0
      %s273 = sadd.s32 %s272, %s270
      %s274 = smul.addr %s268, 4
      %s275 = sadd.s32 %s273, %s274
      %s276 = smul.addr %s275, 8
      %s277 = scalar_lea.vmem %s0, %s276
      %p278 = pneg %p66
      %p279 = pneg %p63
      %p280 = scmp.lt.s32.totalorder %s21, 1
      %s281 = scalar_select %p280, %s21, 1
      %p282 = scmp.lt.s32.totalorder %s22, 3
      %s283 = scalar_select %p282, %s22, 3
      %p284 = scmp.lt.s32.totalorder %s24, 0
      %s285 = scalar_select %p284, %s24, 0
      %s286 = sadd.s32 %s285, %s283
      %s287 = smul.addr %s281, 4
      %s288 = sadd.s32 %s286, %s287
      %s289 = smul.addr %s288, 8
      %s290 = scalar_lea.vmem %s1, %s289
      %p291 = pneg %p96
      %p292 = pneg %p93
      %p293 = scmp.lt.s32.totalorder %s21, 1
      %s294 = scalar_select %p293, %s21, 1
      %p295 = scmp.lt.s32.totalorder %s22, 3
      %s296 = scalar_select %p295, %s22, 3
      %p297 = scmp.lt.s32.totalorder %s24, 0
      %s298 = scalar_select %p297, %s24, 0
      %s299 = sadd.s32 %s298, %s296
      %s300 = smul.addr %s294, 4
      %s301 = sadd.s32 %s299, %s300
      %s302 = smul.addr %s301, 8
      %s303 = scalar_lea.vmem %s2, %s302
      %p304 = pneg %p126
      %p305 = pneg %p123
      %p306 = scmp.lt.s32.totalorder %s21, 1
      %s307 = scalar_select %p306, %s21, 1
      %p308 = scmp.lt.s32.totalorder %s23, 0
      %s309 = scalar_select %p308, %s23, 0
      %p310 = scmp.lt.s32.totalorder %s24, 0
      %s311 = scalar_select %p310, %s24, 0
      %s312 = sadd.s32 %s311, %s309
      %s313 = sadd.s32 %s312, %s307
      %s314 = smul.addr %s313, 8
      %s315 = scalar_lea.vmem %s3, %s314
      %p316 = pneg %p156
      %p317 = pneg %p153
      %p318 = pneg %p186
      %p319 = pneg %p183
      %p320 = scmp.lt.s32.totalorder %s21, 1
      %s321 = scalar_select %p320, %s21, 1
      %p322 = scmp.lt.s32.totalorder %s22, 3
      %s323 = scalar_select %p322, %s22, 3
      %p324 = scmp.lt.s32.totalorder %s23, 0
      %s325 = scalar_select %p324, %s23, 0
      %s326 = sadd.s32 %s325, %s323
      %s327 = smul.addr %s321, 4
      %s328 = sadd.s32 %s326, %s327
      %s329 = smul.addr %s328, 8
      %s330 = scalar_lea.vmem %s4, %s329
      %p331 = scmp.lt.s32.totalorder %s21, 1
      %s332 = scalar_select %p331, %s21, 1
      %p333 = scmp.lt.s32.totalorder %s22, 3
      %s334 = scalar_select %p333, %s22, 3
      %p335 = scmp.lt.s32.totalorder %s23, 0
      %s336 = scalar_select %p335, %s23, 0
      %s337 = sadd.s32 %s336, %s334
      %s338 = smul.addr %s332, 4
      %s339 = sadd.s32 %s337, %s338
      %s340 = smul.addr %s339, 8
      %s341 = scalar_lea.vmem %s0, %s340
      %p342 = scmp.lt.s32.totalorder %s21, 1
      %s343 = scalar_select %p342, %s21, 1
      %p344 = scmp.lt.s32.totalorder %s22, 3
      %s345 = scalar_select %p344, %s22, 3
      %p346 = scmp.lt.s32.totalorder %s24, 0
      %s347 = scalar_select %p346, %s24, 0
      %s348 = sadd.s32 %s347, %s345
      %s349 = smul.addr %s343, 4
      %s350 = sadd.s32 %s348, %s349
      %s351 = smul.addr %s350, 8
      %s352 = scalar_lea.vmem %s1, %s351
      %p353 = scmp.lt.s32.totalorder %s21, 1
      %s354 = scalar_select %p353, %s21, 1
      %p355 = scmp.lt.s32.totalorder %s22, 3
      %s356 = scalar_select %p355, %s22, 3
      %p357 = scmp.lt.s32.totalorder %s24, 0
      %s358 = scalar_select %p357, %s24, 0
      %s359 = sadd.s32 %s358, %s356
      %s360 = smul.addr %s354, 4
      %s361 = sadd.s32 %s359, %s360
      %s362 = smul.addr %s361, 8
      %s363 = scalar_lea.vmem %s2, %s362
      %p364 = scmp.lt.s32.totalorder %s21, 1
      %s365 = scalar_select %p364, %s21, 1
      %p366 = scmp.lt.s32.totalorder %s23, 0
      %s367 = scalar_select %p366, %s23, 0
      %p368 = scmp.lt.s32.totalorder %s24, 0
      %s369 = scalar_select %p368, %s24, 0
      %s370 = sadd.s32 %s369, %s367
      %s371 = sadd.s32 %s370, %s365
      %s372 = smul.addr %s371, 8
      %s373 = scalar_lea.vmem %s3, %s372
      %p374 = scmp.lt.s32.totalorder %s21, 1
      %s375 = scalar_select %p374, %s21, 1
      %p376 = scmp.lt.s32.totalorder %s22, 3
      %s377 = scalar_select %p376, %s22, 3
      %p378 = scmp.lt.s32.totalorder %s23, 0
      %s379 = scalar_select %p378, %s23, 0
      %s380 = sadd.s32 %s379, %s377
      %s381 = smul.addr %s375, 4
      %s382 = sadd.s32 %s380, %s381
      %s383 = smul.addr %s382, 8
      %s384 = scalar_lea.vmem %s4, %s383
      %p385 = scmp.eq.s32.totalorder %s24, 0
      // Predicated region
      $region37: #{attention_forward.8} parent=35 // pred_check
        %p386 = pneg %p385
      $region38: #{attention_forward.8} parent=35 // pred_check_branch
        %388 = sbr.rel (%p386) target = $region40
      $region39: #{attention_forward.8} parent=35 // pred_region
        %vm389 = vcmask 7168
        %390 = vst.msk [vmem:[#allocation2] sm:$0xff] %vm389, -inf
        %391 = vst.msk [vmem:[#allocation3] sm:$0xff] %vm389, 0.0
        %vm392 = vcmask 523264
        %393 = vst.msk [vmem:[#allocation4] sm:$0xff] %vm392, 0.0
      $region40: #{attention_forward.8} parent=35 // pred_fallthru
        _
      %v394 = vld [vmem:[%s341] sm:$0xff]
      %v395 = vld [vmem:[%s352] sm:$0xff]
      %v396 = vld [vmem:[%s373] sm:$0xff]
      %vm397 = vcmask 523264
      %v399 = vsel %vm397, %v394, 0
      %v402 = vsel %vm397, %v395, 0
      %404 = vmatprep.subr.mxu0 0.0
      %405 = vmatpush1.xpose.msra.mxu0 %v402
      %406 = vmatprep.subr.mxu0 0.0
      %407 = vmatpush1.xpose.msra.mxu0 0.0
      %408 = vmatprep.subr.mxu0 0.0
      %409 = vmatpush1.xpose.msra.mxu0 0.0
      %410 = vmatprep.subr.mxu0 0.0
      %411 = vmatpush1.xpose.msra.mxu0 0.0
      %412 = vmatprep.subr.mxu0 0.0
      %413 = vmatpush1.xpose.msra.mxu0 0.0
      %414 = vmatprep.subr.mxu0 0.0
      %415 = vmatpush1.xpose.msra.mxu0 0.0
      %416 = vmatprep.subr.mxu0 0.0
      %417 = vmatpush1.xpose.msra.mxu0 0.0
      %418 = vmatprep.subr.mxu0 0.0
      %419 = vmatpush1.xpose.msra.mxu0 0.0
      %420 = vmatprep.subr.mxu0 0.0
      %421 = vmatpush1.xpose.msra.mxu0 0.0
      %422 = vmatprep.subr.mxu0 0.0
      %423 = vmatpush1.xpose.msra.mxu0 0.0
      %424 = vmatprep.subr.mxu0 0.0
      %425 = vmatpush1.xpose.msra.mxu0 0.0
      %426 = vmatprep.subr.mxu0 0.0
      %427 = vmatpush1.xpose.msra.mxu0 0.0
      %428 = vmatprep.subr.mxu0 0.0
      %429 = vmatpush1.xpose.msra.mxu0 0.0
      %430 = vmatprep.subr.mxu0 0.0
      %431 = vmatpush1.xpose.msra.mxu0 0.0
      %432 = vmatprep.subr.mxu0 0.0
      %433 = vmatpush1.xpose.msra.mxu0 0.0
      %434 = vmatprep.subr.mxu0 0.0
      %435 = vmatpush1.xpose.msra.mxu0 0.0
      %436 = vmatprep.subr.mxu0 0.0
      %437 = vmatpush1.xpose.msra.mxu0 0.0
      %438 = vmatprep.subr.mxu0 0.0
      %439 = vmatpush1.xpose.msra.mxu0 0.0
      %440 = vmatprep.subr.mxu0 0.0
      %441 = vmatpush1.xpose.msra.mxu0 0.0
      %442 = vmatprep.subr.mxu0 0.0
      %443 = vmatpush1.xpose.msra.mxu0 0.0
      %444 = vmatprep.subr.mxu0 0.0
      %445 = vmatpush1.xpose.msra.mxu0 0.0
      %446 = vmatprep.subr.mxu0 0.0
      %447 = vmatpush1.xpose.msra.mxu0 0.0
      %448 = vmatprep.subr.mxu0 0.0
      %449 = vmatpush1.xpose.msra.mxu0 0.0
      %450 = vmatprep.subr.mxu0 0.0
      %451 = vmatpush1.xpose.msra.mxu0 0.0
      %452 = vmatprep.subr.mxu0 0.0
      %453 = vmatpush1.xpose.msra.mxu0 0.0
      %454 = vmatprep.subr.mxu0 0.0
      %455 = vmatpush1.xpose.msra.mxu0 0.0
      %456 = vmatprep.subr.mxu0 0.0
      %457 = vmatpush1.xpose.msra.mxu0 0.0
      %458 = vmatprep.subr.mxu0 0.0
      %459 = vmatpush1.xpose.msra.mxu0 0.0
      %460 = vmatprep.subr.mxu0 0.0
      %461 = vmatpush1.xpose.msra.mxu0 0.0
      %462 = vmatprep.subr.mxu0 0.0
      %463 = vmatpush1.xpose.msra.mxu0 0.0
      %464 = vmatprep.subr.mxu0 0.0
      %465 = vmatpush1.xpose.msra.mxu0 0.0
      %466 = vmatprep.subr.mxu0 0.0
      %467 = vmatpush1.xpose.msra.mxu0 0.0
      %468 = vmatprep.mubr.f32.mxu0 0.0
      %469 = vmatmul.mubr.f32.gmra.mrb[0].mxu0 %v399
      %v470 = vpop.f32.mrb[0].mxu0
      %v471 = vadd.f32 %v396, %v470
      %v472 = vpop.f32.mrb[0].mxu0
      %473 = vdwg.mxu0
      %v474 = vld [vmem:[#allocation2] sm:$0xff]
      %vm475 = vcmask 64512
      %v476 = vsel %vm475, %v471, -inf
      %477 = vmax.xlane.f32.xlu0 %v476
      %v478 = vpop.xlane.xlu0 %477
      %v479 = vmax.f32 %v474, %v478
      %v480 = vsub.f32 %v474, %v479
      %v481 = vmul.f32 %v480, 1.442695
      %v482 = vpow.pop %v481
      %484 = vset.pattern.permute.xlu0 0
      %485 = vperm.xlu0 %484, %v479
      %v486 = vpop.permute.xlu0 %485
      %v488 = vsub.f32 %v471, %v486
      %v489 = vmul.f32 %v488, 1.442695
      %v490 = vpow.pop %v489
      %v491 = vld [vmem:[#allocation3] sm:$0xff]
      %v492 = vmul.f32 %v482, %v491
      %v493 = vsel %vm475, %v490, 0.0
      %494 = vadd.xlane.f32.xlu0 %v493
      %v495 = vpop.xlane.xlu0 %494
      %v496 = vadd.f32 %v492, %v495
      %vm497 = vcmask 7168
      %498 = vst.msk [vmem:[#allocation3] sm:$0xff] %vm497, %v496
      %v499 = vld [vmem:[#allocation4] sm:$0xff]
      %501 = vset.pattern.permute.xlu0 0
      %502 = vperm.xlu0 %501, %v482
      %v503 = vpop.permute.xlu0 %502
      %v505 = vmul.f32 %v503, %v499
      %v506 = vld [vmem:[%s363] sm:$0xff]
      %v508 = vsel %vm475, %v490, 0
      %510 = vmatprep.subr.mxu0 0.0
      %511 = vmatpush1.msra.mxu0 %v506
      %512 = vmatprep.subr.mxu0 0.0
      %513 = vmatpush1.msra.mxu0 0.0
      %514 = vmatprep.subr.mxu0 0.0
      %515 = vmatpush1.msra.mxu0 0.0
      %516 = vmatprep.subr.mxu0 0.0
      %517 = vmatpush1.msra.mxu0 0.0
      %518 = vmatprep.subr.mxu0 0.0
      %519 = vmatpush1.msra.mxu0 0.0
      %520 = vmatprep.subr.mxu0 0.0
      %521 = vmatpush1.msra.mxu0 0.0
      %522 = vmatprep.subr.mxu0 0.0
      %523 = vmatpush1.msra.mxu0 0.0
      %524 = vmatprep.subr.mxu0 0.0
      %525 = vmatpush1.msra.mxu0 0.0
      %526 = vmatprep.subr.mxu0 0.0
      %527 = vmatpush1.msra.mxu0 0.0
      %528 = vmatprep.subr.mxu0 0.0
      %529 = vmatpush1.msra.mxu0 0.0
      %530 = vmatprep.subr.mxu0 0.0
      %531 = vmatpush1.msra.mxu0 0.0
      %532 = vmatprep.subr.mxu0 0.0
      %533 = vmatpush1.msra.mxu0 0.0
      %534 = vmatprep.subr.mxu0 0.0
      %535 = vmatpush1.msra.mxu0 0.0
      %536 = vmatprep.subr.mxu0 0.0
      %537 = vmatpush1.msra.mxu0 0.0
      %538 = vmatprep.subr.mxu0 0.0
      %539 = vmatpush1.msra.mxu0 0.0
      %540 = vmatprep.subr.mxu0 0.0
      %541 = vmatpush1.msra.mxu0 0.0
      %542 = vmatprep.subr.mxu0 0.0
      %543 = vmatpush1.msra.mxu0 0.0
      %544 = vmatprep.subr.mxu0 0.0
      %545 = vmatpush1.msra.mxu0 0.0
      %546 = vmatprep.subr.mxu0 0.0
      %547 = vmatpush1.msra.mxu0 0.0
      %548 = vmatprep.subr.mxu0 0.0
      %549 = vmatpush1.msra.mxu0 0.0
      %550 = vmatprep.subr.mxu0 0.0
      %551 = vmatpush1.msra.mxu0 0.0
      %552 = vmatprep.subr.mxu0 0.0
      %553 = vmatpush1.msra.mxu0 0.0
      %554 = vmatprep.subr.mxu0 0.0
      %555 = vmatpush1.msra.mxu0 0.0
      %556 = vmatprep.subr.mxu0 0.0
      %557 = vmatpush1.msra.mxu0 0.0
      %558 = vmatprep.subr.mxu0 0.0
      %559 = vmatpush1.msra.mxu0 0.0
      %560 = vmatprep.subr.mxu0 0.0
      %561 = vmatpush1.msra.mxu0 0.0
      %562 = vmatprep.subr.mxu0 0.0
      %563 = vmatpush1.msra.mxu0 0.0
      %564 = vmatprep.subr.mxu0 0.0
      %565 = vmatpush1.msra.mxu0 0.0
      %566 = vmatprep.subr.mxu0 0.0
      %567 = vmatpush1.msra.mxu0 0.0
      %568 = vmatprep.subr.mxu0 0.0
      %569 = vmatpush1.msra.mxu0 0.0
      %570 = vmatprep.subr.mxu0 0.0
      %571 = vmatpush1.msra.mxu0 0.0
      %572 = vmatprep.subr.mxu0 0.0
      %573 = vmatpush1.msra.mxu0 0.0
      %574 = vmatprep.mubr.f32.mxu0 0.0
      %575 = vmatmul.mubr.f32.gmra.mrb[0].mxu0 %v508
      %v576 = vpop.f32.mrb[0].mxu0
      %v577 = vadd.f32 0.0, %v576
      %v578 = vpop.f32.mrb[0].mxu0
      %579 = vdwg.mxu0
      %v580 = vadd.f32 %v505, %v577
      %581 = vst.msk [vmem:[#allocation4] sm:$0xff] %vm397, %v580
      %582 = vst.msk [vmem:[#allocation2] sm:$0xff] %vm497, %v479
      // Predicated region
      $region41: #{attention_forward.8} parent=35 // pred_check
        %p583 = pneg %p385
      $region42: #{attention_forward.8} parent=35 // pred_check_branch
        %585 = sbr.rel (%p583) target = $region44
      $region43: #{attention_forward.8} parent=35 // pred_region
        %v586 = vld [vmem:[#allocation3] sm:$0xff]
        %v587 = vrcp.pop %v586
        %v588 = vld [vmem:[#allocation4] sm:$0xff]
        %590 = vset.pattern.permute.xlu0 0
        %591 = vperm.xlu0 %590, %v587
        %v592 = vpop.permute.xlu0 %591
        %v594 = vmul.f32 %v588, %v592
        %595 = vst.msk [vmem:[%s384] sm:$0xff] %vm397, %v594
      $region44: #{attention_forward.8} parent=35 // pred_fallthru
        _
      %p596 = scmp.lt.s32.totalorder %s21, 1
      %s597 = scalar_select %p596, %s21, 1
      %p598 = scmp.lt.s32.totalorder %s22, 3
      %s599 = scalar_select %p598, %s22, 3
      %p600 = scmp.lt.s32.totalorder %s23, 0
      %s601 = scalar_select %p600, %s23, 0
      %s602 = sadd.s32 %s601, %s599
      %s603 = smul.addr %s597, 4
      %s604 = sadd.s32 %s602, %s603
      %s605 = smul.addr %s604, 8
      %s606 = scalar_lea.vmem %s4, %s605
      // Predicated region
      $region45: #{attention_forward.8} parent=35 // pred_check
        %p607 = pneg %p183
      $region46: #{attention_forward.8} parent=35 // pred_check_branch
        %609 = sbr.rel (%p607) target = $region48
      $region47: #{attention_forward.8} parent=35 // pred_region
        _
      $region48: #{attention_forward.8} parent=35 // pred_fallthru
        _
    $region36: #{attention_forward.8} parent=5 // pred_fallthru
      _
    %p610 = scmp.le.s32.totalorder 2, %s10
    // Predicated region
    $region49: #{attention_forward.8} parent=5 // pred_check
      %p611 = pneg %p610
    $region50: #{attention_forward.8} parent=5 // pred_check_branch
      %613 = sbr.rel (%p611) target = $region52
    $region51: #{attention_forward.8} parent=5 // pred_region
      %s614 = ssub.s32 %s10, 2
      // Predicated region
      $region53: #{attention_forward.8} parent=51 // pred_check
        %p615 = pneg %p189
      $region54: #{attention_forward.8} parent=51 // pred_check_branch
        %617 = sbr.rel (%p615) target = $region56
      $region55: #{attention_forward.8} parent=51 // pred_region
        %p618 = scmp.lt.s32.totalorder %s25, 1
        %s619 = scalar_select %p618, %s25, 1
        %p620 = scmp.lt.s32.totalorder %s26, 3
        %s621 = scalar_select %p620, %s26, 3
        %p622 = scmp.lt.s32.totalorder %s27, 0
        %s623 = scalar_select %p622, %s27, 0
        %s624 = sadd.s32 %s623, %s621
        %s625 = smul.addr %s619, 4
        %s626 = sadd.s32 %s624, %s625
        %s627 = smul.addr %s626, 8
        %s628 = scalar_lea.vmem %s4, %s627
      $region56: #{attention_forward.8} parent=51 // pred_fallthru
        _
    $region52: #{attention_forward.8} parent=5 // pred_fallthru
      _
  $region6: #{attention_forward.8} parent=0 // loop_footer
    %s14 = sadd.s32 1, %s10
  $region7: #{attention_forward.8} parent=0 // loop_footer_branch
    %9 = sbr.rel target = $region3
  $region8: #{attention_forward.8} parent=0 // loop_exit
    _

// kernel: attention_forward.5
$region0: #{attention_forward.5}
  #allocation0 [shape = 'u32[]', space=smem, size = 0x4, offset = 0x4, fixed_abs, tag = 'smem constant byte address 0x4 - core index']
  #allocation1 [shape = 'u32[144,128]{1,0:T(1,128)}', space=vmem, size = 0x12000, scoped, tag = 'internal scratch']
  #allocation2 [shape = 'f32[16,256]{1,0:T(8,128)}', space=vmem, size = 0x4000, scoped, tag = 'scratch operand']
  %s0 = inlined_call_operand.vmem [shape: f32[16,256], index: 0, kind: input, shape index: {}]
  %s1 = inlined_call_operand.vmem [shape: f32[256,256], index: 1, kind: input, shape index: {}]
  %s2 = inlined_call_operand.vmem [shape: f32[1,256], index: 2, kind: input, shape index: {}]
  %s3 = inlined_call_operand.vmem [shape: f32[16,256], index: 3, kind: output, shape index: {}]
  %s4 = sld [smem:[#allocation0]]
  $region30: #{attention_forward.5} parent=0
    _
  %s6 = ssub.s32 1, %s4
  %s7 = scalar_select 0, %s6, %s4
  // Predicated region
  $region2: #{attention_forward.5} parent=0 // pred_check
    _
  $region3: #{attention_forward.5} parent=0 // pred_check_branch
    %9 = sbr.rel (0) target = $region5
  $region4: #{attention_forward.5} parent=0 // pred_region
    _
  $region5: #{attention_forward.5} parent=0 // pred_fallthru
    _
  // Predicated region
  $region6: #{attention_forward.5} parent=0 // pred_check
    _
  $region7: #{attention_forward.5} parent=0 // pred_check_branch
    %11 = sbr.rel (0) target = $region9
  $region8: #{attention_forward.5} parent=0 // pred_region
    _
  $region9: #{attention_forward.5} parent=0 // pred_fallthru
    _
  // Predicated region
  $region10: #{attention_forward.5} parent=0 // pred_check
    _
  $region11: #{attention_forward.5} parent=0 // pred_check_branch
    %13 = sbr.rel (0) target = $region13
  $region12: #{attention_forward.5} parent=0 // pred_region
    _
  $region13: #{attention_forward.5} parent=0 // pred_fallthru
    _
  %p14 = scmp.eq.s32.totalorder 0, 0
  // Predicated region
  $region14: #{attention_forward.5} parent=0 // pred_check
    %p15 = pneg %p14
  $region15: #{attention_forward.5} parent=0 // pred_check_branch
    %17 = sbr.rel (%p15) target = $region17
  $region16: #{attention_forward.5} parent=0 // pred_region
    %18 = vst [vmem:[#allocation2] sm:$0xff] 0.0
    %19 = vst [vmem:[#allocation2 + $0x8] sm:$0xff] 0.0
    %20 = vst [vmem:[#allocation2 + $0x10] sm:$0xff] 0.0
    %21 = vst [vmem:[#allocation2 + $0x18] sm:$0xff] 0.0
  $region17: #{attention_forward.5} parent=0 // pred_fallthru
    _
  %v22 = vld [vmem:[#allocation2] sm:$0xff]
  %v23 = vld [vmem:[#allocation2 + $0x8] sm:$0xff]
  %v24 = vld [vmem:[#allocation2 + $0x10] sm:$0xff]
  %v25 = vld [vmem:[#allocation2 + $0x18] sm:$0xff]
  %v26 = vld [vmem:[%s0] sm:$0xff]
  %v27 = vld [vmem:[%s0 + $0x8] sm:$0xff]
  %v28 = vld [vmem:[%s0 + $0x10] sm:$0xff]
  %v29 = vld [vmem:[%s0 + $0x18] sm:$0xff]
  %v30 = vld [vmem:[%s1] sm:$0xff]
  %v31 = vld [vmem:[%s1 + $0x8] sm:$0xff]
  %v32 = vld [vmem:[%s1 + $0x10] sm:$0xff]
  %v33 = vld [vmem:[%s1 + $0x18] sm:$0xff]
  %v34 = vld [vmem:[%s1 + $0x20] sm:$0xff]
  %v35 = vld [vmem:[%s1 + $0x28] sm:$0xff]
  %v36 = vld [vmem:[%s1 + $0x30] sm:$0xff]
  %v37 = vld [vmem:[%s1 + $0x38] sm:$0xff]
  %v38 = vld [vmem:[%s1 + $0x40] sm:$0xff]
  %v39 = vld [vmem:[%s1 + $0x48] sm:$0xff]
  %v40 = vld [vmem:[%s1 + $0x50] sm:$0xff]
  %v41 = vld [vmem:[%s1 + $0x58] sm:$0xff]
  %v42 = vld [vmem:[%s1 + $0x60] sm:$0xff]
  %v43 = vld [vmem:[%s1 + $0x68] sm:$0xff]
  %v44 = vld [vmem:[%s1 + $0x70] sm:$0xff]
  %v45 = vld [vmem:[%s1 + $0x78] sm:$0xff]
  %v46 = vld [vmem:[%s1 + $0x80] sm:$0xff]
  %v47 = vld [vmem:[%s1 + $0x88] sm:$0xff]
  %v48 = vld [vmem:[%s1 + $0x90] sm:$0xff]
  %v49 = vld [vmem:[%s1 + $0x98] sm:$0xff]
  %v50 = vld [vmem:[%s1 + $0xa0] sm:$0xff]
  %v51 = vld [vmem:[%s1 + $0xa8] sm:$0xff]
  %v52 = vld [vmem:[%s1 + $0xb0] sm:$0xff]
  %v53 = vld [vmem:[%s1 + $0xb8] sm:$0xff]
  %v54 = vld [vmem:[%s1 + $0xc0] sm:$0xff]
  %v55 = vld [vmem:[%s1 + $0xc8] sm:$0xff]
  %v56 = vld [vmem:[%s1 + $0xd0] sm:$0xff]
  %v57 = vld [vmem:[%s1 + $0xd8] sm:$0xff]
  %v58 = vld [vmem:[%s1 + $0xe0] sm:$0xff]
  %v59 = vld [vmem:[%s1 + $0xe8] sm:$0xff]
  %v60 = vld [vmem:[%s1 + $0xf0] sm:$0xff]
  %v61 = vld [vmem:[%s1 + $0xf8] sm:$0xff]
  %v62 = vld [vmem:[%s1 + $0x100] sm:$0xff]
  %v63 = vld [vmem:[%s1 + $0x108] sm:$0xff]
  %v64 = vld [vmem:[%s1 + $0x110] sm:$0xff]
  %v65 = vld [vmem:[%s1 + $0x118] sm:$0xff]
  %v66 = vld [vmem:[%s1 + $0x120] sm:$0xff]
  %v67 = vld [vmem:[%s1 + $0x128] sm:$0xff]
  %v68 = vld [vmem:[%s1 + $0x130] sm:$0xff]
  %v69 = vld [vmem:[%s1 + $0x138] sm:$0xff]
  %v70 = vld [vmem:[%s1 + $0x140] sm:$0xff]
  %v71 = vld [vmem:[%s1 + $0x148] sm:$0xff]
  %v72 = vld [vmem:[%s1 + $0x150] sm:$0xff]
  %v73 = vld [vmem:[%s1 + $0x158] sm:$0xff]
  %v74 = vld [vmem:[%s1 + $0x160] sm:$0xff]
  %v75 = vld [vmem:[%s1 + $0x168] sm:$0xff]
  %v76 = vld [vmem:[%s1 + $0x170] sm:$0xff]
  %v77 = vld [vmem:[%s1 + $0x178] sm:$0xff]
  %v78 = vld [vmem:[%s1 + $0x180] sm:$0xff]
  %v79 = vld [vmem:[%s1 + $0x188] sm:$0xff]
  %v80 = vld [vmem:[%s1 + $0x190] sm:$0xff]
  %v81 = vld [vmem:[%s1 + $0x198] sm:$0xff]
  %v82 = vld [vmem:[%s1 + $0x1a0] sm:$0xff]
  %v83 = vld [vmem:[%s1 + $0x1a8] sm:$0xff]
  %v84 = vld [vmem:[%s1 + $0x1b0] sm:$0xff]
  %v85 = vld [vmem:[%s1 + $0x1b8] sm:$0xff]
  %v86 = vld [vmem:[%s1 + $0x1c0] sm:$0xff]
  %v87 = vld [vmem:[%s1 + $0x1c8] sm:$0xff]
  %v88 = vld [vmem:[%s1 + $0x1d0] sm:$0xff]
  %v89 = vld [vmem:[%s1 + $0x1d8] sm:$0xff]
  %v90 = vld [vmem:[%s1 + $0x1e0] sm:$0xff]
  %v91 = vld [vmem:[%s1 + $0x1e8] sm:$0xff]
  %v92 = vld [vmem:[%s1 + $0x1f0] sm:$0xff]
  %v93 = vld [vmem:[%s1 + $0x1f8] sm:$0xff]
  %94 = vmatprep.subr.mxu0 %v31
  %95 = vmatpush1.msra.mxu0 %v30
  %96 = vmatprep.subr.mxu0 %v33
  %97 = vmatpush1.msra.mxu0 %v32
  %98 = vmatprep.subr.mxu0 %v35
  %99 = vmatpush1.msra.mxu0 %v34
  %100 = vmatprep.subr.mxu0 %v37
  %101 = vmatpush1.msra.mxu0 %v36
  %102 = vmatprep.subr.mxu0 %v39
  %103 = vmatpush1.msra.mxu0 %v38
  %104 = vmatprep.subr.mxu0 %v41
  %105 = vmatpush1.msra.mxu0 %v40
  %106 = vmatprep.subr.mxu0 %v43
  %107 = vmatpush1.msra.mxu0 %v42
  %108 = vmatprep.subr.mxu0 %v45
  %109 = vmatpush1.msra.mxu0 %v44
  %110 = vmatprep.subr.mxu0 %v47
  %111 = vmatpush1.msra.mxu0 %v46
  %112 = vmatprep.subr.mxu0 %v49
  %113 = vmatpush1.msra.mxu0 %v48
  %114 = vmatprep.subr.mxu0 %v51
  %115 = vmatpush1.msra.mxu0 %v50
  %116 = vmatprep.subr.mxu0 %v53
  %117 = vmatpush1.msra.mxu0 %v52
  %118 = vmatprep.subr.mxu0 %v55
  %119 = vmatpush1.msra.mxu0 %v54
  %120 = vmatprep.subr.mxu0 %v57
  %121 = vmatpush1.msra.mxu0 %v56
  %122 = vmatprep.subr.mxu0 %v59
  %123 = vmatpush1.msra.mxu0 %v58
  %124 = vmatprep.subr.mxu0 %v61
  %125 = vmatpush1.msra.mxu0 %v60
  %126 = vmatprep.subr.mxu0 %v63
  %127 = vmatpush1.msra.mxu0 %v62
  %128 = vmatprep.subr.mxu0 %v65
  %129 = vmatpush1.msra.mxu0 %v64
  %130 = vmatprep.subr.mxu0 %v67
  %131 = vmatpush1.msra.mxu0 %v66
  %132 = vmatprep.subr.mxu0 %v69
  %133 = vmatpush1.msra.mxu0 %v68
  %134 = vmatprep.subr.mxu0 %v71
  %135 = vmatpush1.msra.mxu0 %v70
  %136 = vmatprep.subr.mxu0 %v73
  %137 = vmatpush1.msra.mxu0 %v72
  %138 = vmatprep.subr.mxu0 %v75
  %139 = vmatpush1.msra.mxu0 %v74
  %140 = vmatprep.subr.mxu0 %v77
  %141 = vmatpush1.msra.mxu0 %v76
  %142 = vmatprep.subr.mxu0 %v79
  %143 = vmatpush1.msra.mxu0 %v78
  %144 = vmatprep.subr.mxu0 %v81
  %145 = vmatpush1.msra.mxu0 %v80
  %146 = vmatprep.subr.mxu0 %v83
  %147 = vmatpush1.msra.mxu0 %v82
  %148 = vmatprep.subr.mxu0 %v85
  %149 = vmatpush1.msra.mxu0 %v84
  %150 = vmatprep.subr.mxu0 %v87
  %151 = vmatpush1.msra.mxu0 %v86
  %152 = vmatprep.subr.mxu0 %v89
  %153 = vmatpush1.msra.mxu0 %v88
  %154 = vmatprep.subr.mxu0 %v91
  %155 = vmatpush1.msra.mxu0 %v90
  %156 = vmatprep.subr.mxu0 %v93
  %157 = vmatpush1.msra.mxu0 %v92
  %158 = vmatprep.mubr.f32.mxu0 %v27
  %159 = vmatmul.mubr.f32.gmra.mrb[0].mxu0 %v26
  %v160 = vpop.f32.mrb[0].mxu0
  %v161 = vadd.f32 0.0, %v160
  %v162 = vpop.f32.mrb[0].mxu0
  %v163 = vadd.f32 0.0, %v162
  %164 = vmatprep.mubr.f32.mxu0 %v29
  %165 = vmatmul.mubr.f32.gmra.mrb[0].mxu0 %v28
  %v166 = vpop.f32.mrb[0].mxu0
  %v167 = vadd.f32 0.0, %v166
  %v168 = vpop.f32.mrb[0].mxu0
  %v169 = vadd.f32 0.0, %v168
  %170 = vdwg.mxu0
  %v171 = vadd.f32 %v22, %v161
  %v172 = vadd.f32 %v23, %v163
  %v173 = vadd.f32 %v24, %v167
  %v174 = vadd.f32 %v25, %v169
  %175 = vst [vmem:[#allocation2] sm:$0xff] %v171
  %176 = vst [vmem:[#allocation2 + $0x8] sm:$0xff] %v172
  %177 = vst [vmem:[#allocation2 + $0x10] sm:$0xff] %v173
  %178 = vst [vmem:[#allocation2 + $0x18] sm:$0xff] %v174
  // Predicated region
  $region18: #{attention_forward.5} parent=0 // pred_check
    %p179 = pneg %p14
  $region19: #{attention_forward.5} parent=0 // pred_check_branch
    %181 = sbr.rel (%p179) target = $region21
  $region20: #{attention_forward.5} parent=0 // pred_region
    %v182 = vld [vmem:[#allocation2] sm:$0xff]
    %v183 = vld [vmem:[#allocation2 + $0x8] sm:$0xff]
    %v184 = vld [vmem:[#allocation2 + $0x10] sm:$0xff]
    %v185 = vld [vmem:[#allocation2 + $0x18] sm:$0xff]
    %v186 = vld [vmem:[%s2] sm:$0x3]
    %v188 = vlaneseq
    %v189 = vshrl.u32 %v188, 7
    %v190 = vsub.s32 0, %v189
    %v191 = vrot.slane %v186, %v190
    %v192 = vlaneseq
    %v193 = vshrl.u32 %v192, 7
    %v194 = vsub.s32 1, %v193
    %v195 = vrot.slane %v186, %v194
    %v198 = vadd.f32 %v182, %v191
    %v199 = vadd.f32 %v183, %v195
    %v200 = vadd.f32 %v184, %v191
    %v201 = vadd.f32 %v185, %v195
    %v202 = vmul.f32 %v198, 0.125
    %v203 = vmul.f32 %v199, 0.125
    %v204 = vmul.f32 %v200, 0.125
    %v205 = vmul.f32 %v201, 0.125
    %206 = vst [vmem:[%s3] sm:$0xff] %v202
    %207 = vst [vmem:[%s3 + $0x8] sm:$0xff] %v203
    %208 = vst [vmem:[%s3 + $0x10] sm:$0xff] %v204
    %209 = vst [vmem:[%s3 + $0x18] sm:$0xff] %v205
  $region21: #{attention_forward.5} parent=0 // pred_fallthru
    _
  // Predicated region
  $region22: #{attention_forward.5} parent=0 // pred_check
    _
  $region23: #{attention_forward.5} parent=0 // pred_check_branch
    %211 = sbr.rel (0) target = $region25
  $region24: #{attention_forward.5} parent=0 // pred_region
    _
  $region25: #{attention_forward.5} parent=0 // pred_fallthru
    _
  // Predicated region
  $region26: #{attention_forward.5} parent=0 // pred_check
    _
  $region27: #{attention_forward.5} parent=0 // pred_check_branch
    %213 = sbr.rel (0) target = $region29
  $region28: #{attention_forward.5} parent=0 // pred_region
    _
  $region29: #{attention_forward.5} parent=0 // pred_fallthru
    _

// kernel: attention_forward.9
$region0: #{attention_forward.9}
  #allocation0 [shape = 'u32[]', space=smem, size = 0x4, offset = 0x4, fixed_abs, tag = 'smem constant byte address 0x4 - core index']
  #allocation1 [shape = 'u32[144,128]{1,0:T(1,128)}', space=vmem, size = 0x12000, scoped, tag = 'internal scratch']
  #allocation2 [shape = 'f32[16,256]{1,0:T(8,128)}', space=vmem, size = 0x4000, scoped, tag = 'scratch operand']
  %s0 = inlined_call_operand.vmem [shape: f32[16,256], index: 0, kind: input, shape index: {}]
  %s1 = inlined_call_operand.vmem [shape: f32[256,256], index: 1, kind: input, shape index: {}]
  %s2 = inlined_call_operand.vmem [shape: f32[1,256], index: 2, kind: input, shape index: {}]
  %s3 = inlined_call_operand.hbm [shape: f32[16,256], index: 3, kind: output, shape index: {}]
  %s4 = sld [smem:[#allocation0]]
  $region30: #{attention_forward.9} parent=0
    _
  %s6 = ssub.s32 1, %s4
  %s7 = scalar_select 0, %s6, %s4
  $region1: #{attention_forward.9} parent=0
    #allocation3 [shape = 'u8[16384]{0}', space=vmem, size = 0x4000, scoped, tag = 'output window, operand 0, single buffered']
    #allocation4 [shape = 's32[1]{0}', space=sflag, size = 0x4, scoped, tag = 'scoped memory for attention_forward.9']
    %8 = vsyncpa [#allocation4], 0
    // Predicated region
    $region2: #{attention_forward.9} parent=1 // pred_check
      _
    $region3: #{attention_forward.9} parent=1 // pred_check_branch
      %10 = sbr.rel (0) target = $region5
    $region4: #{attention_forward.9} parent=1 // pred_region
      _
    $region5: #{attention_forward.9} parent=1 // pred_fallthru
      _
    // Predicated region
    $region6: #{attention_forward.9} parent=1 // pred_check
      _
    $region7: #{attention_forward.9} parent=1 // pred_check_branch
      %12 = sbr.rel (0) target = $region9
    $region8: #{attention_forward.9} parent=1 // pred_region
      _
    $region9: #{attention_forward.9} parent=1 // pred_fallthru
      _
    // Predicated region
    $region10: #{attention_forward.9} parent=1 // pred_check
      _
    $region11: #{attention_forward.9} parent=1 // pred_check_branch
      %14 = sbr.rel (0) target = $region13
    $region12: #{attention_forward.9} parent=1 // pred_region
      _
    $region13: #{attention_forward.9} parent=1 // pred_fallthru
      _
    %p15 = scmp.eq.s32.totalorder 0, 0
    // Predicated region
    $region14: #{attention_forward.9} parent=1 // pred_check
      %p16 = pneg %p15
    $region15: #{attention_forward.9} parent=1 // pred_check_branch
      %18 = sbr.rel (%p16) target = $region17
    $region16: #{attention_forward.9} parent=1 // pred_region
      %19 = vst [vmem:[#allocation2] sm:$0xff] 0.0
      %20 = vst [vmem:[#allocation2 + $0x8] sm:$0xff] 0.0
      %21 = vst [vmem:[#allocation2 + $0x10] sm:$0xff] 0.0
      %22 = vst [vmem:[#allocation2 + $0x18] sm:$0xff] 0.0
    $region17: #{attention_forward.9} parent=1 // pred_fallthru
      _
    %v23 = vld [vmem:[#allocation2] sm:$0xff]
    %v24 = vld [vmem:[#allocation2 + $0x8] sm:$0xff]
    %v25 = vld [vmem:[#allocation2 + $0x10] sm:$0xff]
    %v26 = vld [vmem:[#allocation2 + $0x18] sm:$0xff]
    %v27 = vld [vmem:[%s0] sm:$0xff]
    %v28 = vld [vmem:[%s0 + $0x8] sm:$0xff]
    %v29 = vld [vmem:[%s0 + $0x10] sm:$0xff]
    %v30 = vld [vmem:[%s0 + $0x18] sm:$0xff]
    %v31 = vld [vmem:[%s1] sm:$0xff]
    %v32 = vld [vmem:[%s1 + $0x8] sm:$0xff]
    %v33 = vld [vmem:[%s1 + $0x10] sm:$0xff]
    %v34 = vld [vmem:[%s1 + $0x18] sm:$0xff]
    %v35 = vld [vmem:[%s1 + $0x20] sm:$0xff]
    %v36 = vld [vmem:[%s1 + $0x28] sm:$0xff]
    %v37 = vld [vmem:[%s1 + $0x30] sm:$0xff]
    %v38 = vld [vmem:[%s1 + $0x38] sm:$0xff]
    %v39 = vld [vmem:[%s1 + $0x40] sm:$0xff]
    %v40 = vld [vmem:[%s1 + $0x48] sm:$0xff]
    %v41 = vld [vmem:[%s1 + $0x50] sm:$0xff]
    %v42 = vld [vmem:[%s1 + $0x58] sm:$0xff]
    %v43 = vld [vmem:[%s1 + $0x60] sm:$0xff]
    %v44 = vld [vmem:[%s1 + $0x68] sm:$0xff]
    %v45 = vld [vmem:[%s1 + $0x70] sm:$0xff]
    %v46 = vld [vmem:[%s1 + $0x78] sm:$0xff]
    %v47 = vld [vmem:[%s1 + $0x80] sm:$0xff]
    %v48 = vld [vmem:[%s1 + $0x88] sm:$0xff]
    %v49 = vld [vmem:[%s1 + $0x90] sm:$0xff]
    %v50 = vld [vmem:[%s1 + $0x98] sm:$0xff]
    %v51 = vld [vmem:[%s1 + $0xa0] sm:$0xff]
    %v52 = vld [vmem:[%s1 + $0xa8] sm:$0xff]
    %v53 = vld [vmem:[%s1 + $0xb0] sm:$0xff]
    %v54 = vld [vmem:[%s1 + $0xb8] sm:$0xff]
    %v55 = vld [vmem:[%s1 + $0xc0] sm:$0xff]
    %v56 = vld [vmem:[%s1 + $0xc8] sm:$0xff]
    %v57 = vld [vmem:[%s1 + $0xd0] sm:$0xff]
    %v58 = vld [vmem:[%s1 + $0xd8] sm:$0xff]
    %v59 = vld [vmem:[%s1 + $0xe0] sm:$0xff]
    %v60 = vld [vmem:[%s1 + $0xe8] sm:$0xff]
    %v61 = vld [vmem:[%s1 + $0xf0] sm:$0xff]
    %v62 = vld [vmem:[%s1 + $0xf8] sm:$0xff]
    %v63 = vld [vmem:[%s1 + $0x100] sm:$0xff]
    %v64 = vld [vmem:[%s1 + $0x108] sm:$0xff]
    %v65 = vld [vmem:[%s1 + $0x110] sm:$0xff]
    %v66 = vld [vmem:[%s1 + $0x118] sm:$0xff]
    %v67 = vld [vmem:[%s1 + $0x120] sm:$0xff]
    %v68 = vld [vmem:[%s1 + $0x128] sm:$0xff]
    %v69 = vld [vmem:[%s1 + $0x130] sm:$0xff]
    %v70 = vld [vmem:[%s1 + $0x138] sm:$0xff]
    %v71 = vld [vmem:[%s1 + $0x140] sm:$0xff]
    %v72 = vld [vmem:[%s1 + $0x148] sm:$0xff]
    %v73 = vld [vmem:[%s1 + $0x150] sm:$0xff]
    %v74 = vld [vmem:[%s1 + $0x158] sm:$0xff]
    %v75 = vld [vmem:[%s1 + $0x160] sm:$0xff]
    %v76 = vld [vmem:[%s1 + $0x168] sm:$0xff]
    %v77 = vld [vmem:[%s1 + $0x170] sm:$0xff]
    %v78 = vld [vmem:[%s1 + $0x178] sm:$0xff]
    %v79 = vld [vmem:[%s1 + $0x180] sm:$0xff]
    %v80 = vld [vmem:[%s1 + $0x188] sm:$0xff]
    %v81 = vld [vmem:[%s1 + $0x190] sm:$0xff]
    %v82 = vld [vmem:[%s1 + $0x198] sm:$0xff]
    %v83 = vld [vmem:[%s1 + $0x1a0] sm:$0xff]
    %v84 = vld [vmem:[%s1 + $0x1a8] sm:$0xff]
    %v85 = vld [vmem:[%s1 + $0x1b0] sm:$0xff]
    %v86 = vld [vmem:[%s1 + $0x1b8] sm:$0xff]
    %v87 = vld [vmem:[%s1 + $0x1c0] sm:$0xff]
    %v88 = vld [vmem:[%s1 + $0x1c8] sm:$0xff]
    %v89 = vld [vmem:[%s1 + $0x1d0] sm:$0xff]
    %v90 = vld [vmem:[%s1 + $0x1d8] sm:$0xff]
    %v91 = vld [vmem:[%s1 + $0x1e0] sm:$0xff]
    %v92 = vld [vmem:[%s1 + $0x1e8] sm:$0xff]
    %v93 = vld [vmem:[%s1 + $0x1f0] sm:$0xff]
    %v94 = vld [vmem:[%s1 + $0x1f8] sm:$0xff]
    %95 = vmatprep.subr.mxu0 %v32
    %96 = vmatpush1.msra.mxu0 %v31
    %97 = vmatprep.subr.mxu0 %v34
    %98 = vmatpush1.msra.mxu0 %v33
    %99 = vmatprep.subr.mxu0 %v36
    %100 = vmatpush1.msra.mxu0 %v35
    %101 = vmatprep.subr.mxu0 %v38
    %102 = vmatpush1.msra.mxu0 %v37
    %103 = vmatprep.subr.mxu0 %v40
    %104 = vmatpush1.msra.mxu0 %v39
    %105 = vmatprep.subr.mxu0 %v42
    %106 = vmatpush1.msra.mxu0 %v41
    %107 = vmatprep.subr.mxu0 %v44
    %108 = vmatpush1.msra.mxu0 %v43
    %109 = vmatprep.subr.mxu0 %v46
    %110 = vmatpush1.msra.mxu0 %v45
    %111 = vmatprep.subr.mxu0 %v48
    %112 = vmatpush1.msra.mxu0 %v47
    %113 = vmatprep.subr.mxu0 %v50
    %114 = vmatpush1.msra.mxu0 %v49
    %115 = vmatprep.subr.mxu0 %v52
    %116 = vmatpush1.msra.mxu0 %v51
    %117 = vmatprep.subr.mxu0 %v54
    %118 = vmatpush1.msra.mxu0 %v53
    %119 = vmatprep.subr.mxu0 %v56
    %120 = vmatpush1.msra.mxu0 %v55
    %121 = vmatprep.subr.mxu0 %v58
    %122 = vmatpush1.msra.mxu0 %v57
    %123 = vmatprep.subr.mxu0 %v60
    %124 = vmatpush1.msra.mxu0 %v59
    %125 = vmatprep.subr.mxu0 %v62
    %126 = vmatpush1.msra.mxu0 %v61
    %127 = vmatprep.subr.mxu0 %v64
    %128 = vmatpush1.msra.mxu0 %v63
    %129 = vmatprep.subr.mxu0 %v66
    %130 = vmatpush1.msra.mxu0 %v65
    %131 = vmatprep.subr.mxu0 %v68
    %132 = vmatpush1.msra.mxu0 %v67
    %133 = vmatprep.subr.mxu0 %v70
    %134 = vmatpush1.msra.mxu0 %v69
    %135 = vmatprep.subr.mxu0 %v72
    %136 = vmatpush1.msra.mxu0 %v71
    %137 = vmatprep.subr.mxu0 %v74
    %138 = vmatpush1.msra.mxu0 %v73
    %139 = vmatprep.subr.mxu0 %v76
    %140 = vmatpush1.msra.mxu0 %v75
    %141 = vmatprep.subr.mxu0 %v78
    %142 = vmatpush1.msra.mxu0 %v77
    %143 = vmatprep.subr.mxu0 %v80
    %144 = vmatpush1.msra.mxu0 %v79
    %145 = vmatprep.subr.mxu0 %v82
    %146 = vmatpush1.msra.mxu0 %v81
    %147 = vmatprep.subr.mxu0 %v84
    %148 = vmatpush1.msra.mxu0 %v83
    %149 = vmatprep.subr.mxu0 %v86
    %150 = vmatpush1.msra.mxu0 %v85
    %151 = vmatprep.subr.mxu0 %v88
    %152 = vmatpush1.msra.mxu0 %v87
    %153 = vmatprep.subr.mxu0 %v90
    %154 = vmatpush1.msra.mxu0 %v89
    %155 = vmatprep.subr.mxu0 %v92
    %156 = vmatpush1.msra.mxu0 %v91
    %157 = vmatprep.subr.mxu0 %v94
    %158 = vmatpush1.msra.mxu0 %v93
    %159 = vmatprep.mubr.f32.mxu0 %v28
    %160 = vmatmul.mubr.f32.gmra.mrb[0].mxu0 %v27
    %v161 = vpop.f32.mrb[0].mxu0
    %v162 = vadd.f32 0.0, %v161
    %v163 = vpop.f32.mrb[0].mxu0
    %v164 = vadd.f32 0.0, %v163
    %165 = vmatprep.mubr.f32.mxu0 %v30
    %166 = vmatmul.mubr.f32.gmra.mrb[0].mxu0 %v29
    %v167 = vpop.f32.mrb[0].mxu0
    %v168 = vadd.f32 0.0, %v167
    %v169 = vpop.f32.mrb[0].mxu0
    %v170 = vadd.f32 0.0, %v169
    %171 = vdwg.mxu0
    %v172 = vadd.f32 %v23, %v162
    %v173 = vadd.f32 %v24, %v164
    %v174 = vadd.f32 %v25, %v168
    %v175 = vadd.f32 %v26, %v170
    %176 = vst [vmem:[#allocation2] sm:$0xff] %v172
    %177 = vst [vmem:[#allocation2 + $0x8] sm:$0xff] %v173
    %178 = vst [vmem:[#allocation2 + $0x10] sm:$0xff] %v174
    %179 = vst [vmem:[#allocation2 + $0x18] sm:$0xff] %v175
    // Predicated region
    $region18: #{attention_forward.9} parent=1 // pred_check
      %p180 = pneg %p15
    $region19: #{attention_forward.9} parent=1 // pred_check_branch
      %182 = sbr.rel (%p180) target = $region21
    $region20: #{attention_forward.9} parent=1 // pred_region
      %v183 = vld [vmem:[#allocation2] sm:$0xff]
      %v184 = vld [vmem:[#allocation2 + $0x8] sm:$0xff]
      %v185 = vld [vmem:[#allocation2 + $0x10] sm:$0xff]
      %v186 = vld [vmem:[#allocation2 + $0x18] sm:$0xff]
      %v187 = vld [vmem:[%s2] sm:$0x3]
      %v189 = vlaneseq
      %v190 = vshrl.u32 %v189, 7
      %v191 = vsub.s32 0, %v190
      %v192 = vrot.slane %v187, %v191
      %v193 = vlaneseq
      %v194 = vshrl.u32 %v193, 7
      %v195 = vsub.s32 1, %v194
      %v196 = vrot.slane %v187, %v195
      %v199 = vadd.f32 %v183, %v192
      %v200 = vadd.f32 %v184, %v196
      %v201 = vadd.f32 %v185, %v192
      %v202 = vadd.f32 %v186, %v196
      %203 = vst [vmem:[#allocation3] sm:$0xff] %v199
      %204 = vst [vmem:[#allocation3 + $0x8] sm:$0xff] %v200
      %205 = vst [vmem:[#allocation3 + $0x10] sm:$0xff] %v201
      %206 = vst [vmem:[#allocation3 + $0x18] sm:$0xff] %v202
    $region21: #{attention_forward.9} parent=1 // pred_fallthru
      _
    // Predicated region
    $region22: #{attention_forward.9} parent=1 // pred_check
      _
    $region23: #{attention_forward.9} parent=1 // pred_check_branch
      %208 = sbr.rel (0) target = $region25
    $region24: #{attention_forward.9} parent=1 // pred_region
      %s210 = ssub.s32 512, 512
      %211 = vsyncadd [#allocation4], %s210
      %s212 = sshll.u32 [#allocation3], 4
      %s213 = int_to_ptr.vmem [resolvable:$true] %s212
      %218 = dma.vmem_to_hbm [thread:$0]  %s213, 512, %s3, [#allocation4], 256, 256, 16
    $region25: #{attention_forward.9} parent=1 // pred_fallthru
      _
    // Predicated region
    $region26: #{attention_forward.9} parent=1 // pred_check
      _
    $region27: #{attention_forward.9} parent=1 // pred_check_branch
      %220 = sbr.rel (0) target = $region29
    $region28: #{attention_forward.9} parent=1 // pred_region
      %221 = dma.done [#allocation4], 512
    $region29: #{attention_forward.9} parent=1 // pred_fallthru
      _
    %222 = vsyncpa [#allocation4], 1

</llo_original>
